<compile_context>
chip_gen: v6e
topology: v6e:2x2x1
jax: 0.10.0
libtpu: 0.0.40
codegen_flags: <defaults>
</compile_context>

<pallas_src>
import numpy as np
import jax
import jax.numpy as jnp
from jax.experimental import pallas as pl
from jax.experimental.pallas import tpu as pltpu

# ---- problem sizes (small, consistent with the module) ----------------------
N = 8            # number of nodes
H = 4            # num_heads
D = 32           # in_dim == out_dim (residual requires equality)
DH = D // H      # per-head dim
E = N * N        # fully-connected graph -> N*N edges
EPS_BN = 1e-5
EPS_Z = 1e-6

VMEM_SPEC = pl.BlockSpec(memory_space=pltpu.MemorySpace.VMEM)

# ---- constant one-hot matrices (edge expansion / head reduction) -------------
# edge id = dst*N + src  ->  dst = e // N, src = e % N
_e_ids = np.arange(E)
_REP_DST = jnp.asarray((_e_ids[:, None] // N == np.arange(N)[None, :])
                       .astype(np.float32))                       # [E, N]
_REP_SRC = jnp.asarray((_e_ids[:, None] % N == np.arange(N)[None, :])
                       .astype(np.float32))                       # [E, N]
_AGG = jnp.asarray((_e_ids[None, :] // N == np.arange(N)[:, None])
                   .astype(np.float32))                           # [N, E]
_head_of_chan = np.arange(D) // DH
_HEAD_SUM = jnp.asarray((_head_of_chan[:, None] == np.arange(H)[None, :])
                        .astype(np.float32))                      # [D, H]
_HEAD_EXPAND = jnp.asarray((_head_of_chan[None, :] == np.arange(H)[:, None])
                           .astype(np.float32))                   # [H, D]


# ---- the single fused kernel --------------------------------------------------
def _layer_kernel(
        h_ref, e_ref,                                     # inputs
        wqkv_ref, we_ref,                                 # attention projections
        repd_ref, reps_ref, hsum_ref, hexp_ref, agg_ref,  # one-hot constants
        wo_h_ref, bo_h_ref, g1_h_ref, b1_h_ref, w1_h_ref, bb1_h_ref,
        w2_h_ref, bb2_h_ref, g2_h_ref, b2_h_ref,          # h-stream post params
        wo_e_ref, bo_e_ref, g1_e_ref, b1_e_ref, w1_e_ref, bb1_e_ref,
        w2_e_ref, bb2_e_ref, g2_e_ref, b2_e_ref,          # e-stream post params
        hout_ref, eout_ref):                              # outputs
    f32 = jnp.float32
    h = h_ref[...]                                        # [N, D]
    e = e_ref[...]                                        # [E, D]

    # ---- projections: one fused [N,D]@[D,3D] matmul + edge projection --------
    qkv = jnp.dot(h, wqkv_ref[...], preferred_element_type=f32)   # [N, 3D]
    q = qkv[:, :D]
    k = qkv[:, D:2 * D]
    v = qkv[:, 2 * D:]
    ep = jnp.dot(e, we_ref[...], preferred_element_type=f32)      # [E, D]

    # ---- expand node features to edges (lane-dense, via one-hot matmuls) -----
    q_e = jnp.dot(repd_ref[...], q, preferred_element_type=f32)   # [E, D] q[dst]
    k_e = jnp.dot(reps_ref[...], k, preferred_element_type=f32)   # [E, D] k[src]
    v_e = jnp.dot(reps_ref[...], v, preferred_element_type=f32)   # [E, D] v[src]

    # ---- edge scores for all heads/channels in one elementwise pass ----------
    inv_sqrt_d = 1.0 / float(np.sqrt(DH))
    score = q_e * k_e * inv_sqrt_d * ep                            # [E, D] == e_attn

    # per-head logits: sum over each head's DH channels via one-hot MXU matmul
    logits = jnp.dot(score, hsum_ref[...], preferred_element_type=f32)   # [E, H]
    s = jnp.exp(jnp.clip(logits, -5.0, 5.0))                             # [E, H]
    # broadcast per-head weights back to all D channels
    s_full = jnp.dot(s, hexp_ref[...], preferred_element_type=f32)       # [E, D]

    # ---- aggregate src -> dst with one [N,E]@[E,D] matmul each ----------------
    num = jnp.dot(agg_ref[...], s_full * v_e, preferred_element_type=f32)  # [N, D]
    den = jnp.dot(agg_ref[...], s_full, preferred_element_type=f32)        # [N, D]
    h_attn = num * pl.reciprocal(den + EPS_Z, approx=False)                # [N, D]

    # ---- O-proj + residual + BN + FFN + residual + BN (shared helper) --------
    def post(xa, xin, wo, bo, g1, b1, w1, bb1, w2, bb2, g2, b2):
        # dropout(p=0.0) is a no-op; layer_norm=False -> omitted.
        x = jnp.dot(xa, wo[...], preferred_element_type=f32) + bo[...]
        x = xin + x                                              # residual 1
        # BatchNorm1d, training-mode batch statistics (biased variance)
        mu = jnp.mean(x, axis=0, keepdims=True)
        var = jnp.mean((x - mu) ** 2, axis=0, keepdims=True)
        x = (x - mu) * jax.lax.rsqrt(var + EPS_BN) * g1[...] + b1[...]
        x2 = x
        y = jnp.dot(x, w1[...], preferred_element_type=f32) + bb1[...]
        y = jnp.maximum(y, 0.0)                                  # ReLU
        y = jnp.dot(y, w2[...], preferred_element_type=f32) + bb2[...]
        x = x2 + y                                               # residual 2
        mu2 = jnp.mean(x, axis=0, keepdims=True)
        var2 = jnp.mean((x - mu2) ** 2, axis=0, keepdims=True)
        return (x - mu2) * jax.lax.rsqrt(var2 + EPS_BN) * g2[...] + b2[...]

    hout_ref[...] = post(h_attn, h,
                         wo_h_ref, bo_h_ref, g1_h_ref, b1_h_ref,
                         w1_h_ref, bb1_h_ref, w2_h_ref, bb2_h_ref,
                         g2_h_ref, b2_h_ref)
    # TODO(synk): on v7x the independent e-stream post could run on the 2nd
    # TensorCore via core_map; kept on one core here (neutral on v5e/v6e).
    eout_ref[...] = post(score, e,
                         wo_e_ref, bo_e_ref, g1_e_ref, b1_e_ref,
                         w1_e_ref, bb1_e_ref, w2_e_ref, bb2_e_ref,
                         g2_e_ref, b2_e_ref)


# ---- wrapper -------------------------------------------------------------------
def graph_transformer_layer(params, h, e):
    args = (h, e,
            params['wqkv'], params['we'],
            _REP_DST, _REP_SRC, _HEAD_SUM, _HEAD_EXPAND, _AGG,
            params['wo_h'], params['bo_h'], params['g1_h'], params['b1_h'],
            params['w1_h'], params['bb1_h'], params['w2_h'], params['bb2_h'],
            params['g2_h'], params['b2_h'],
            params['wo_e'], params['bo_e'], params['g1_e'], params['b1_e'],
            params['w1_e'], params['bb1_e'], params['w2_e'], params['bb2_e'],
            params['g2_e'], params['b2_e'])
    return pl.pallas_call(
        _layer_kernel,
        out_shape=(jax.ShapeDtypeStruct((N, D), jnp.float32),
                   jax.ShapeDtypeStruct((E, D), jnp.float32)),
        in_specs=[VMEM_SPEC] * len(args),
        out_specs=(VMEM_SPEC, VMEM_SPEC),
    )(*args)


# ---- pure-JAX reference (for correctness check) --------------------------------
def reference(params, h, e):
    wqkv = params['wqkv']
    q = h @ wqkv[:, :D]
    k = h @ wqkv[:, D:2 * D]
    v = h @ wqkv[:, 2 * D:]
    ep = e @ params['we']
    qh = q.reshape(N, H, DH)
    kh = k.reshape(N, H, DH)
    vh = v.reshape(N, H, DH)
    eph = ep.reshape(N, N, H, DH)
    score = qh[:, None, :, :] * kh[None, :, :, :] / np.sqrt(DH) * eph  # [dst,src,H,d]
    e_attn = score.reshape(E, D)
    s = jnp.exp(jnp.clip(score.sum(-1), -5.0, 5.0))                    # [dst,src,H]
    wv = jnp.einsum('ijh,jhd->ihd', s, vh)                             # [dst,H,d]
    z = s.sum(axis=1)                                                  # [dst,H]
    h_attn = (wv / (z[..., None] + EPS_Z)).reshape(N, D)

    def bn(x, g, b):
        mu = x.mean(0, keepdims=True)
        var = ((x - mu) ** 2).mean(0, keepdims=True)
        return (x - mu) / jnp.sqrt(var + EPS_BN) * g + b

    def post(xa, xin, pre):
        x = xa @ params[f'wo_{pre}'] + params[f'bo_{pre}']
        x = xin + x
        x = bn(x, params[f'g1_{pre}'], params[f'b1_{pre}'])
        x2 = x
        y = jnp.maximum(x @ params[f'w1_{pre}'] + params[f'bb1_{pre}'], 0.0)
        y = y @ params[f'w2_{pre}'] + params[f'bb2_{pre}']
        return bn(x2 + y, params[f'g2_{pre}'], params[f'b2_{pre}'])

    return post(h_attn, h, 'h'), post(e_attn, e, 'e')


# ---- deterministic parameter init ----------------------------------------------
def init_params(key):
    ks = jax.random.split(key, 16)
    lin = lambda k, fi, fo: (jax.random.normal(k, (fi, fo), jnp.float32)
                             / np.sqrt(fi)).astype(jnp.float32)
    bias = lambda k, fo: 0.01 * jax.random.normal(k, (1, fo), jnp.float32)
    wq = lin(ks[0], D, D)
    wk = lin(ks[1], D, D)
    wv = lin(ks[2], D, D)
    p = {
        # attention projections (use_bias=False); Q/K/V fused into one matrix
        'wqkv': jnp.concatenate([wq, wk, wv], axis=1),   # [D, 3D]
        'we': lin(ks[3], D, D),
    }
    for i, pre in enumerate(('h', 'e')):
        o = 4 + 6 * i
        p[f'wo_{pre}'] = lin(ks[o + 0], D, D)
        p[f'bo_{pre}'] = bias(ks[o + 1], D)
        p[f'w1_{pre}'] = lin(ks[o + 2], D, 2 * D)
        p[f'bb1_{pre}'] = bias(ks[o + 3], 2 * D)
        p[f'w2_{pre}'] = lin(ks[o + 4], 2 * D, D)
        p[f'bb2_{pre}'] = bias(ks[o + 5], D)
        # BatchNorm1d defaults: weight=1, bias=0
        p[f'g1_{pre}'] = jnp.ones((1, D), jnp.float32)
        p[f'b1_{pre}'] = jnp.zeros((1, D), jnp.float32)
        p[f'g2_{pre}'] = jnp.ones((1, D), jnp.float32)
        p[f'b2_{pre}'] = jnp.zeros((1, D), jnp.float32)
    return p


if __name__ == "__main__":
    key = jax.random.PRNGKey(0)
    kp, kh, ke = jax.random.split(key, 3)
    params = init_params(kp)
    h = jax.random.normal(kh, (N, D), jnp.float32)
    e = jax.random.normal(ke, (E, D), jnp.float32)

    h_out, e_out = jax.jit(graph_transformer_layer)(params, h, e)
    jax.block_until_ready((h_out, e_out))

    h_ref, e_ref = reference(params, h, e)
    assert np.allclose(np.asarray(h_out), np.asarray(h_ref), rtol=1e-4, atol=1e-4)
    assert np.allclose(np.asarray(e_out), np.asarray(e_ref), rtol=1e-4, atol=1e-4)

    print("KERNEL_OK")
</pallas_src>

<mosaic_0001>
module attributes {stable_mosaic.version = 11 : i64} {
  func.func @_layer_kernel(%arg0: memref<8x32xf32, #tpu.memory_space<vmem>>, %arg1: memref<64x32xf32, #tpu.memory_space<vmem>>, %arg2: memref<32x96xf32, #tpu.memory_space<vmem>>, %arg3: memref<32x32xf32, #tpu.memory_space<vmem>>, %arg4: memref<64x8xf32, #tpu.memory_space<vmem>>, %arg5: memref<64x8xf32, #tpu.memory_space<vmem>>, %arg6: memref<32x4xf32, #tpu.memory_space<vmem>>, %arg7: memref<4x32xf32, #tpu.memory_space<vmem>>, %arg8: memref<8x64xf32, #tpu.memory_space<vmem>>, %arg9: memref<32x32xf32, #tpu.memory_space<vmem>>, %arg10: memref<1x32xf32, #tpu.memory_space<vmem>>, %arg11: memref<1x32xf32, #tpu.memory_space<vmem>>, %arg12: memref<1x32xf32, #tpu.memory_space<vmem>>, %arg13: memref<32x64xf32, #tpu.memory_space<vmem>>, %arg14: memref<1x64xf32, #tpu.memory_space<vmem>>, %arg15: memref<64x32xf32, #tpu.memory_space<vmem>>, %arg16: memref<1x32xf32, #tpu.memory_space<vmem>>, %arg17: memref<1x32xf32, #tpu.memory_space<vmem>>, %arg18: memref<1x32xf32, #tpu.memory_space<vmem>>, %arg19: memref<32x32xf32, #tpu.memory_space<vmem>>, %arg20: memref<1x32xf32, #tpu.memory_space<vmem>>, %arg21: memref<1x32xf32, #tpu.memory_space<vmem>>, %arg22: memref<1x32xf32, #tpu.memory_space<vmem>>, %arg23: memref<32x64xf32, #tpu.memory_space<vmem>>, %arg24: memref<1x64xf32, #tpu.memory_space<vmem>>, %arg25: memref<64x32xf32, #tpu.memory_space<vmem>>, %arg26: memref<1x32xf32, #tpu.memory_space<vmem>>, %arg27: memref<1x32xf32, #tpu.memory_space<vmem>>, %arg28: memref<1x32xf32, #tpu.memory_space<vmem>>, %arg29: memref<8x32xf32, #tpu.memory_space<vmem>>, %arg30: memref<64x32xf32, #tpu.memory_space<vmem>>) attributes {dimension_semantics = [], scalar_prefetch = 0 : i64, scratch_operands = 0 : i64, tpu.core_type = #tpu.core_type<tc>} {
    %c0 = arith.constant 0 : index
    %c0_0 = arith.constant 0 : index
    %0 = vector.load %arg0[%c0, %c0_0] : memref<8x32xf32, #tpu.memory_space<vmem>>, vector<8x32xf32>
    %c0_1 = arith.constant 0 : index
    %c0_2 = arith.constant 0 : index
    %1 = vector.load %arg1[%c0_1, %c0_2] : memref<64x32xf32, #tpu.memory_space<vmem>>, vector<64x32xf32>
    %c0_3 = arith.constant 0 : index
    %c0_4 = arith.constant 0 : index
    %2 = vector.load %arg2[%c0_3, %c0_4] : memref<32x96xf32, #tpu.memory_space<vmem>>, vector<32x96xf32>
    %cst = arith.constant dense<0.000000e+00> : vector<8x96xf32>
    %3 = tpu.matmul %0, %2, %cst {dimension_numbers = #tpu.dot_dimension_numbers<[1], [0], [0], [1], [0, 0, 1, 1], [], []>} : vector<8x32xf32>, vector<32x96xf32>, vector<8x96xf32> -> vector<8x96xf32>
    %4 = vector.extract_strided_slice %3 {offsets = [0, 0], sizes = [8, 32], strides = [1, 1]} : vector<8x96xf32> to vector<8x32xf32>
    %5 = vector.extract_strided_slice %3 {offsets = [0, 32], sizes = [8, 32], strides = [1, 1]} : vector<8x96xf32> to vector<8x32xf32>
    %6 = vector.extract_strided_slice %3 {offsets = [0, 64], sizes = [8, 32], strides = [1, 1]} : vector<8x96xf32> to vector<8x32xf32>
    %c0_5 = arith.constant 0 : index
    %c0_6 = arith.constant 0 : index
    %7 = vector.load %arg3[%c0_5, %c0_6] : memref<32x32xf32, #tpu.memory_space<vmem>>, vector<32x32xf32>
    %cst_7 = arith.constant dense<0.000000e+00> : vector<64x32xf32>
    %8 = tpu.matmul %1, %7, %cst_7 {dimension_numbers = #tpu.dot_dimension_numbers<[1], [0], [0], [1], [0, 0, 1, 1], [], []>} : vector<64x32xf32>, vector<32x32xf32>, vector<64x32xf32> -> vector<64x32xf32>
    %c0_8 = arith.constant 0 : index
    %c0_9 = arith.constant 0 : index
    %9 = vector.load %arg4[%c0_8, %c0_9] : memref<64x8xf32, #tpu.memory_space<vmem>>, vector<64x8xf32>
    %cst_10 = arith.constant dense<0.000000e+00> : vector<64x32xf32>
    %10 = tpu.matmul %9, %4, %cst_10 {dimension_numbers = #tpu.dot_dimension_numbers<[1], [0], [0], [1], [0, 0, 1, 1], [], []>} : vector<64x8xf32>, vector<8x32xf32>, vector<64x32xf32> -> vector<64x32xf32>
    %c0_11 = arith.constant 0 : index
    %c0_12 = arith.constant 0 : index
    %11 = vector.load %arg5[%c0_11, %c0_12] : memref<64x8xf32, #tpu.memory_space<vmem>>, vector<64x8xf32>
    %cst_13 = arith.constant dense<0.000000e+00> : vector<64x32xf32>
    %12 = tpu.matmul %11, %5, %cst_13 {dimension_numbers = #tpu.dot_dimension_numbers<[1], [0], [0], [1], [0, 0, 1, 1], [], []>} : vector<64x8xf32>, vector<8x32xf32>, vector<64x32xf32> -> vector<64x32xf32>
    %c0_14 = arith.constant 0 : index
    %c0_15 = arith.constant 0 : index
    %13 = vector.load %arg5[%c0_14, %c0_15] : memref<64x8xf32, #tpu.memory_space<vmem>>, vector<64x8xf32>
    %cst_16 = arith.constant dense<0.000000e+00> : vector<64x32xf32>
    %14 = tpu.matmul %13, %6, %cst_16 {dimension_numbers = #tpu.dot_dimension_numbers<[1], [0], [0], [1], [0, 0, 1, 1], [], []>} : vector<64x8xf32>, vector<8x32xf32>, vector<64x32xf32> -> vector<64x32xf32>
    %15 = arith.mulf %10, %12 : vector<64x32xf32>
    %cst_17 = arith.constant 0.353553385 : f32
    %16 = vector.broadcast %cst_17 : f32 to vector<64x32xf32>
    %17 = arith.mulf %15, %16 : vector<64x32xf32>
    %18 = arith.mulf %17, %8 : vector<64x32xf32>
    %c0_18 = arith.constant 0 : index
    %c0_19 = arith.constant 0 : index
    %19 = vector.load %arg6[%c0_18, %c0_19] : memref<32x4xf32, #tpu.memory_space<vmem>>, vector<32x4xf32>
    %cst_20 = arith.constant dense<0.000000e+00> : vector<64x4xf32>
    %20 = tpu.matmul %18, %19, %cst_20 {dimension_numbers = #tpu.dot_dimension_numbers<[1], [0], [0], [1], [0, 0, 1, 1], [], []>} : vector<64x32xf32>, vector<32x4xf32>, vector<64x4xf32> -> vector<64x4xf32>
    %cst_21 = arith.constant -5.000000e+00 : f32
    %cst_22 = arith.constant 5.000000e+00 : f32
    %21 = vector.broadcast %cst_21 : f32 to vector<64x4xf32>
    %22 = arith.maximumf %21, %20 : vector<64x4xf32>
    %23 = vector.broadcast %cst_22 : f32 to vector<64x4xf32>
    %24 = arith.minimumf %23, %22 : vector<64x4xf32>
    %25 = math.exp %24 : vector<64x4xf32>
    %c0_23 = arith.constant 0 : index
    %c0_24 = arith.constant 0 : index
    %26 = vector.load %arg7[%c0_23, %c0_24] : memref<4x32xf32, #tpu.memory_space<vmem>>, vector<4x32xf32>
    %cst_25 = arith.constant dense<0.000000e+00> : vector<64x32xf32>
    %27 = tpu.matmul %25, %26, %cst_25 {dimension_numbers = #tpu.dot_dimension_numbers<[1], [0], [0], [1], [0, 0, 1, 1], [], []>} : vector<64x4xf32>, vector<4x32xf32>, vector<64x32xf32> -> vector<64x32xf32>
    %c0_26 = arith.constant 0 : index
    %c0_27 = arith.constant 0 : index
    %28 = vector.load %arg8[%c0_26, %c0_27] : memref<8x64xf32, #tpu.memory_space<vmem>>, vector<8x64xf32>
    %29 = arith.mulf %27, %14 : vector<64x32xf32>
    %cst_28 = arith.constant dense<0.000000e+00> : vector<8x32xf32>
    %30 = tpu.matmul %28, %29, %cst_28 {dimension_numbers = #tpu.dot_dimension_numbers<[1], [0], [0], [1], [0, 0, 1, 1], [], []>} : vector<8x64xf32>, vector<64x32xf32>, vector<8x32xf32> -> vector<8x32xf32>
    %c0_29 = arith.constant 0 : index
    %c0_30 = arith.constant 0 : index
    %31 = vector.load %arg8[%c0_29, %c0_30] : memref<8x64xf32, #tpu.memory_space<vmem>>, vector<8x64xf32>
    %cst_31 = arith.constant dense<0.000000e+00> : vector<8x32xf32>
    %32 = tpu.matmul %31, %27, %cst_31 {dimension_numbers = #tpu.dot_dimension_numbers<[1], [0], [0], [1], [0, 0, 1, 1], [], []>} : vector<8x64xf32>, vector<64x32xf32>, vector<8x32xf32> -> vector<8x32xf32>
    %cst_32 = arith.constant 9.99999997E-7 : f32
    %33 = vector.broadcast %cst_32 : f32 to vector<8x32xf32>
    %34 = arith.addf %32, %33 : vector<8x32xf32>
    %35 = tpu.reciprocal %34 : vector<8x32xf32> -> vector<8x32xf32>
    %36 = arith.mulf %30, %35 : vector<8x32xf32>
    %c0_33 = arith.constant 0 : index
    %c0_34 = arith.constant 0 : index
    %37 = vector.load %arg9[%c0_33, %c0_34] : memref<32x32xf32, #tpu.memory_space<vmem>>, vector<32x32xf32>
    %cst_35 = arith.constant dense<0.000000e+00> : vector<8x32xf32>
    %38 = tpu.matmul %36, %37, %cst_35 {dimension_numbers = #tpu.dot_dimension_numbers<[1], [0], [0], [1], [0, 0, 1, 1], [], []>} : vector<8x32xf32>, vector<32x32xf32>, vector<8x32xf32> -> vector<8x32xf32>
    %c0_36 = arith.constant 0 : index
    %c0_37 = arith.constant 0 : index
    %39 = vector.load %arg10[%c0_36, %c0_37] : memref<1x32xf32, #tpu.memory_space<vmem>>, vector<1x32xf32>
    %40 = vector.broadcast %39 : vector<1x32xf32> to vector<8x32xf32>
    %41 = arith.addf %38, %40 : vector<8x32xf32>
    %42 = arith.addf %0, %41 : vector<8x32xf32>
    %cst_38 = arith.constant dense<0.000000e+00> : vector<32xf32>
    %43 = vector.multi_reduction <add>, %42, %cst_38 [0] : vector<8x32xf32> to vector<32xf32>
    %44 = vector.shape_cast %43 : vector<32xf32> to vector<1x32xf32>
    %cst_39 = arith.constant 8.000000e+00 : f32
    %45 = vector.broadcast %cst_39 : f32 to vector<1x32xf32>
    %46 = arith.divf %44, %45 : vector<1x32xf32>
    %47 = vector.broadcast %46 : vector<1x32xf32> to vector<8x32xf32>
    %48 = arith.subf %42, %47 : vector<8x32xf32>
    %49 = arith.mulf %48, %48 : vector<8x32xf32>
    %cst_40 = arith.constant dense<0.000000e+00> : vector<32xf32>
    %50 = vector.multi_reduction <add>, %49, %cst_40 [0] : vector<8x32xf32> to vector<32xf32>
    %51 = vector.shape_cast %50 : vector<32xf32> to vector<1x32xf32>
    %cst_41 = arith.constant 8.000000e+00 : f32
    %52 = vector.broadcast %cst_41 : f32 to vector<1x32xf32>
    %53 = arith.divf %51, %52 : vector<1x32xf32>
    %54 = vector.broadcast %46 : vector<1x32xf32> to vector<8x32xf32>
    %55 = arith.subf %42, %54 : vector<8x32xf32>
    %cst_42 = arith.constant 9.99999974E-6 : f32
    %56 = vector.broadcast %cst_42 : f32 to vector<1x32xf32>
    %57 = arith.addf %53, %56 : vector<1x32xf32>
    %58 = math.rsqrt %57 : vector<1x32xf32>
    %59 = vector.broadcast %58 : vector<1x32xf32> to vector<8x32xf32>
    %60 = arith.mulf %55, %59 : vector<8x32xf32>
    %c0_43 = arith.constant 0 : index
    %c0_44 = arith.constant 0 : index
    %61 = vector.load %arg11[%c0_43, %c0_44] : memref<1x32xf32, #tpu.memory_space<vmem>>, vector<1x32xf32>
    %62 = vector.broadcast %61 : vector<1x32xf32> to vector<8x32xf32>
    %63 = arith.mulf %60, %62 : vector<8x32xf32>
    %c0_45 = arith.constant 0 : index
    %c0_46 = arith.constant 0 : index
    %64 = vector.load %arg12[%c0_45, %c0_46] : memref<1x32xf32, #tpu.memory_space<vmem>>, vector<1x32xf32>
    %65 = vector.broadcast %64 : vector<1x32xf32> to vector<8x32xf32>
    %66 = arith.addf %63, %65 : vector<8x32xf32>
    %c0_47 = arith.constant 0 : index
    %c0_48 = arith.constant 0 : index
    %67 = vector.load %arg13[%c0_47, %c0_48] : memref<32x64xf32, #tpu.memory_space<vmem>>, vector<32x64xf32>
    %cst_49 = arith.constant dense<0.000000e+00> : vector<8x64xf32>
    %68 = tpu.matmul %66, %67, %cst_49 {dimension_numbers = #tpu.dot_dimension_numbers<[1], [0], [0], [1], [0, 0, 1, 1], [], []>} : vector<8x32xf32>, vector<32x64xf32>, vector<8x64xf32> -> vector<8x64xf32>
    %c0_50 = arith.constant 0 : index
    %c0_51 = arith.constant 0 : index
    %69 = vector.load %arg14[%c0_50, %c0_51] : memref<1x64xf32, #tpu.memory_space<vmem>>, vector<1x64xf32>
    %70 = vector.broadcast %69 : vector<1x64xf32> to vector<8x64xf32>
    %71 = arith.addf %68, %70 : vector<8x64xf32>
    %cst_52 = arith.constant 0.000000e+00 : f32
    %72 = vector.broadcast %cst_52 : f32 to vector<8x64xf32>
    %73 = arith.maximumf %71, %72 : vector<8x64xf32>
    %c0_53 = arith.constant 0 : index
    %c0_54 = arith.constant 0 : index
    %74 = vector.load %arg15[%c0_53, %c0_54] : memref<64x32xf32, #tpu.memory_space<vmem>>, vector<64x32xf32>
    %cst_55 = arith.constant dense<0.000000e+00> : vector<8x32xf32>
    %75 = tpu.matmul %73, %74, %cst_55 {dimension_numbers = #tpu.dot_dimension_numbers<[1], [0], [0], [1], [0, 0, 1, 1], [], []>} : vector<8x64xf32>, vector<64x32xf32>, vector<8x32xf32> -> vector<8x32xf32>
    %c0_56 = arith.constant 0 : index
    %c0_57 = arith.constant 0 : index
    %76 = vector.load %arg16[%c0_56, %c0_57] : memref<1x32xf32, #tpu.memory_space<vmem>>, vector<1x32xf32>
    %77 = vector.broadcast %76 : vector<1x32xf32> to vector<8x32xf32>
    %78 = arith.addf %75, %77 : vector<8x32xf32>
    %79 = arith.addf %66, %78 : vector<8x32xf32>
    %cst_58 = arith.constant dense<0.000000e+00> : vector<32xf32>
    %80 = vector.multi_reduction <add>, %79, %cst_58 [0] : vector<8x32xf32> to vector<32xf32>
    %81 = vector.shape_cast %80 : vector<32xf32> to vector<1x32xf32>
    %cst_59 = arith.constant 8.000000e+00 : f32
    %82 = vector.broadcast %cst_59 : f32 to vector<1x32xf32>
    %83 = arith.divf %81, %82 : vector<1x32xf32>
    %84 = vector.broadcast %83 : vector<1x32xf32> to vector<8x32xf32>
    %85 = arith.subf %79, %84 : vector<8x32xf32>
    %86 = arith.mulf %85, %85 : vector<8x32xf32>
    %cst_60 = arith.constant dense<0.000000e+00> : vector<32xf32>
    %87 = vector.multi_reduction <add>, %86, %cst_60 [0] : vector<8x32xf32> to vector<32xf32>
    %88 = vector.shape_cast %87 : vector<32xf32> to vector<1x32xf32>
    %cst_61 = arith.constant 8.000000e+00 : f32
    %89 = vector.broadcast %cst_61 : f32 to vector<1x32xf32>
    %90 = arith.divf %88, %89 : vector<1x32xf32>
    %91 = vector.broadcast %83 : vector<1x32xf32> to vector<8x32xf32>
    %92 = arith.subf %79, %91 : vector<8x32xf32>
    %cst_62 = arith.constant 9.99999974E-6 : f32
    %93 = vector.broadcast %cst_62 : f32 to vector<1x32xf32>
    %94 = arith.addf %90, %93 : vector<1x32xf32>
    %95 = math.rsqrt %94 : vector<1x32xf32>
    %96 = vector.broadcast %95 : vector<1x32xf32> to vector<8x32xf32>
    %97 = arith.mulf %92, %96 : vector<8x32xf32>
    %c0_63 = arith.constant 0 : index
    %c0_64 = arith.constant 0 : index
    %98 = vector.load %arg17[%c0_63, %c0_64] : memref<1x32xf32, #tpu.memory_space<vmem>>, vector<1x32xf32>
    %99 = vector.broadcast %98 : vector<1x32xf32> to vector<8x32xf32>
    %100 = arith.mulf %97, %99 : vector<8x32xf32>
    %c0_65 = arith.constant 0 : index
    %c0_66 = arith.constant 0 : index
    %101 = vector.load %arg18[%c0_65, %c0_66] : memref<1x32xf32, #tpu.memory_space<vmem>>, vector<1x32xf32>
    %102 = vector.broadcast %101 : vector<1x32xf32> to vector<8x32xf32>
    %103 = arith.addf %100, %102 : vector<8x32xf32>
    %c0_67 = arith.constant 0 : index
    %c0_68 = arith.constant 0 : index
    %104 = vector.load %arg29[%c0_67, %c0_68] : memref<8x32xf32, #tpu.memory_space<vmem>>, vector<8x32xf32>
    tpu.vector_store %arg29[%c0_67, %c0_68], %103 {strides = array<i32>} : memref<8x32xf32, #tpu.memory_space<vmem>>, vector<8x32xf32>,
    %c0_69 = arith.constant 0 : index
    %c0_70 = arith.constant 0 : index
    %105 = vector.load %arg19[%c0_69, %c0_70] : memref<32x32xf32, #tpu.memory_space<vmem>>, vector<32x32xf32>
    %cst_71 = arith.constant dense<0.000000e+00> : vector<64x32xf32>
    %106 = tpu.matmul %18, %105, %cst_71 {dimension_numbers = #tpu.dot_dimension_numbers<[1], [0], [0], [1], [0, 0, 1, 1], [], []>} : vector<64x32xf32>, vector<32x32xf32>, vector<64x32xf32> -> vector<64x32xf32>
    %c0_72 = arith.constant 0 : index
    %c0_73 = arith.constant 0 : index
    %107 = vector.load %arg20[%c0_72, %c0_73] : memref<1x32xf32, #tpu.memory_space<vmem>>, vector<1x32xf32>
    %108 = vector.broadcast %107 : vector<1x32xf32> to vector<64x32xf32>
    %109 = arith.addf %106, %108 : vector<64x32xf32>
    %110 = arith.addf %1, %109 : vector<64x32xf32>
    %cst_74 = arith.constant dense<0.000000e+00> : vector<32xf32>
    %111 = vector.multi_reduction <add>, %110, %cst_74 [0] : vector<64x32xf32> to vector<32xf32>
    %112 = vector.shape_cast %111 : vector<32xf32> to vector<1x32xf32>
    %cst_75 = arith.constant 6.400000e+01 : f32
    %113 = vector.broadcast %cst_75 : f32 to vector<1x32xf32>
    %114 = arith.divf %112, %113 : vector<1x32xf32>
    %115 = vector.broadcast %114 : vector<1x32xf32> to vector<64x32xf32>
    %116 = arith.subf %110, %115 : vector<64x32xf32>
    %117 = arith.mulf %116, %116 : vector<64x32xf32>
    %cst_76 = arith.constant dense<0.000000e+00> : vector<32xf32>
    %118 = vector.multi_reduction <add>, %117, %cst_76 [0] : vector<64x32xf32> to vector<32xf32>
    %119 = vector.shape_cast %118 : vector<32xf32> to vector<1x32xf32>
    %cst_77 = arith.constant 6.400000e+01 : f32
    %120 = vector.broadcast %cst_77 : f32 to vector<1x32xf32>
    %121 = arith.divf %119, %120 : vector<1x32xf32>
    %122 = vector.broadcast %114 : vector<1x32xf32> to vector<64x32xf32>
    %123 = arith.subf %110, %122 : vector<64x32xf32>
    %cst_78 = arith.constant 9.99999974E-6 : f32
    %124 = vector.broadcast %cst_78 : f32 to vector<1x32xf32>
    %125 = arith.addf %121, %124 : vector<1x32xf32>
    %126 = math.rsqrt %125 : vector<1x32xf32>
    %127 = vector.broadcast %126 : vector<1x32xf32> to vector<64x32xf32>
    %128 = arith.mulf %123, %127 : vector<64x32xf32>
    %c0_79 = arith.constant 0 : index
    %c0_80 = arith.constant 0 : index
    %129 = vector.load %arg21[%c0_79, %c0_80] : memref<1x32xf32, #tpu.memory_space<vmem>>, vector<1x32xf32>
    %130 = vector.broadcast %129 : vector<1x32xf32> to vector<64x32xf32>
    %131 = arith.mulf %128, %130 : vector<64x32xf32>
    %c0_81 = arith.constant 0 : index
    %c0_82 = arith.constant 0 : index
    %132 = vector.load %arg22[%c0_81, %c0_82] : memref<1x32xf32, #tpu.memory_space<vmem>>, vector<1x32xf32>
    %133 = vector.broadcast %132 : vector<1x32xf32> to vector<64x32xf32>
    %134 = arith.addf %131, %133 : vector<64x32xf32>
    %c0_83 = arith.constant 0 : index
    %c0_84 = arith.constant 0 : index
    %135 = vector.load %arg23[%c0_83, %c0_84] : memref<32x64xf32, #tpu.memory_space<vmem>>, vector<32x64xf32>
    %cst_85 = arith.constant dense<0.000000e+00> : vector<64x64xf32>
    %136 = tpu.matmul %134, %135, %cst_85 {dimension_numbers = #tpu.dot_dimension_numbers<[1], [0], [0], [1], [0, 0, 1, 1], [], []>} : vector<64x32xf32>, vector<32x64xf32>, vector<64x64xf32> -> vector<64x64xf32>
    %c0_86 = arith.constant 0 : index
    %c0_87 = arith.constant 0 : index
    %137 = vector.load %arg24[%c0_86, %c0_87] : memref<1x64xf32, #tpu.memory_space<vmem>>, vector<1x64xf32>
    %138 = vector.broadcast %137 : vector<1x64xf32> to vector<64x64xf32>
    %139 = arith.addf %136, %138 : vector<64x64xf32>
    %cst_88 = arith.constant 0.000000e+00 : f32
    %140 = vector.broadcast %cst_88 : f32 to vector<64x64xf32>
    %141 = arith.maximumf %139, %140 : vector<64x64xf32>
    %c0_89 = arith.constant 0 : index
    %c0_90 = arith.constant 0 : index
    %142 = vector.load %arg25[%c0_89, %c0_90] : memref<64x32xf32, #tpu.memory_space<vmem>>, vector<64x32xf32>
    %cst_91 = arith.constant dense<0.000000e+00> : vector<64x32xf32>
    %143 = tpu.matmul %141, %142, %cst_91 {dimension_numbers = #tpu.dot_dimension_numbers<[1], [0], [0], [1], [0, 0, 1, 1], [], []>} : vector<64x64xf32>, vector<64x32xf32>, vector<64x32xf32> -> vector<64x32xf32>
    %c0_92 = arith.constant 0 : index
    %c0_93 = arith.constant 0 : index
    %144 = vector.load %arg26[%c0_92, %c0_93] : memref<1x32xf32, #tpu.memory_space<vmem>>, vector<1x32xf32>
    %145 = vector.broadcast %144 : vector<1x32xf32> to vector<64x32xf32>
    %146 = arith.addf %143, %145 : vector<64x32xf32>
    %147 = arith.addf %134, %146 : vector<64x32xf32>
    %cst_94 = arith.constant dense<0.000000e+00> : vector<32xf32>
    %148 = vector.multi_reduction <add>, %147, %cst_94 [0] : vector<64x32xf32> to vector<32xf32>
    %149 = vector.shape_cast %148 : vector<32xf32> to vector<1x32xf32>
    %cst_95 = arith.constant 6.400000e+01 : f32
    %150 = vector.broadcast %cst_95 : f32 to vector<1x32xf32>
    %151 = arith.divf %149, %150 : vector<1x32xf32>
    %152 = vector.broadcast %151 : vector<1x32xf32> to vector<64x32xf32>
    %153 = arith.subf %147, %152 : vector<64x32xf32>
    %154 = arith.mulf %153, %153 : vector<64x32xf32>
    %cst_96 = arith.constant dense<0.000000e+00> : vector<32xf32>
    %155 = vector.multi_reduction <add>, %154, %cst_96 [0] : vector<64x32xf32> to vector<32xf32>
    %156 = vector.shape_cast %155 : vector<32xf32> to vector<1x32xf32>
    %cst_97 = arith.constant 6.400000e+01 : f32
    %157 = vector.broadcast %cst_97 : f32 to vector<1x32xf32>
    %158 = arith.divf %156, %157 : vector<1x32xf32>
    %159 = vector.broadcast %151 : vector<1x32xf32> to vector<64x32xf32>
    %160 = arith.subf %147, %159 : vector<64x32xf32>
    %cst_98 = arith.constant 9.99999974E-6 : f32
    %161 = vector.broadcast %cst_98 : f32 to vector<1x32xf32>
    %162 = arith.addf %158, %161 : vector<1x32xf32>
    %163 = math.rsqrt %162 : vector<1x32xf32>
    %164 = vector.broadcast %163 : vector<1x32xf32> to vector<64x32xf32>
    %165 = arith.mulf %160, %164 : vector<64x32xf32>
    %c0_99 = arith.constant 0 : index
    %c0_100 = arith.constant 0 : index
    %166 = vector.load %arg27[%c0_99, %c0_100] : memref<1x32xf32, #tpu.memory_space<vmem>>, vector<1x32xf32>
    %167 = vector.broadcast %166 : vector<1x32xf32> to vector<64x32xf32>
    %168 = arith.mulf %165, %167 : vector<64x32xf32>
    %c0_101 = arith.constant 0 : index
    %c0_102 = arith.constant 0 : index
    %169 = vector.load %arg28[%c0_101, %c0_102] : memref<1x32xf32, #tpu.memory_space<vmem>>, vector<1x32xf32>
    %170 = vector.broadcast %169 : vector<1x32xf32> to vector<64x32xf32>
    %171 = arith.addf %168, %170 : vector<64x32xf32>
    %c0_103 = arith.constant 0 : index
    %c0_104 = arith.constant 0 : index
    %172 = vector.load %arg30[%c0_103, %c0_104] : memref<64x32xf32, #tpu.memory_space<vmem>>, vector<64x32xf32>
    tpu.vector_store %arg30[%c0_103, %c0_104], %171 {strides = array<i32>} : memref<64x32xf32, #tpu.memory_space<vmem>>, vector<64x32xf32>,
    return
  }
}

</mosaic_0001>

<llo_original>
// kernel: graph_transformer_layer.1
$region0: #{graph_transformer_layer.1}
  #allocation0 [shape = 'u32[]', space=smem, size = 0x4, offset = 0x4, fixed_abs, tag = 'smem constant byte address 0x4 - core index']
  #allocation1 [shape = 'u32[144,128]{1,0:T(1,128)}', space=vmem, size = 0x12000, scoped, tag = 'internal scratch']
  %s0 = inlined_call_operand.smem [shape: u32[31], index: -1, kind: input, shape index: {}]
  %s1 = sld [smem:[%s0]]
  %s2 = scalar_lea.smem %s0, 1
  %s3 = sld [smem:[%s2]]
  %s4 = scalar_lea.smem %s0, 2
  %s5 = sld [smem:[%s4]]
  %s6 = scalar_lea.smem %s0, 3
  %s7 = sld [smem:[%s6]]
  %s8 = scalar_lea.smem %s0, 4
  %s9 = sld [smem:[%s8]]
  %s10 = scalar_lea.smem %s0, 5
  %s11 = sld [smem:[%s10]]
  %s12 = scalar_lea.smem %s0, 6
  %s13 = sld [smem:[%s12]]
  %s14 = scalar_lea.smem %s0, 7
  %s15 = sld [smem:[%s14]]
  %s16 = scalar_lea.smem %s0, 8
  %s17 = sld [smem:[%s16]]
  %s18 = scalar_lea.smem %s0, 9
  %s19 = sld [smem:[%s18]]
  %s20 = scalar_lea.smem %s0, 10
  %s21 = sld [smem:[%s20]]
  %s22 = scalar_lea.smem %s0, 11
  %s23 = sld [smem:[%s22]]
  %s24 = scalar_lea.smem %s0, 12
  %s25 = sld [smem:[%s24]]
  %s26 = scalar_lea.smem %s0, 13
  %s27 = sld [smem:[%s26]]
  %s28 = scalar_lea.smem %s0, 14
  %s29 = sld [smem:[%s28]]
  %s30 = scalar_lea.smem %s0, 15
  %s31 = sld [smem:[%s30]]
  %s32 = scalar_lea.smem %s0, 16
  %s33 = sld [smem:[%s32]]
  %s34 = scalar_lea.smem %s0, 17
  %s35 = sld [smem:[%s34]]
  %s36 = scalar_lea.smem %s0, 18
  %s37 = sld [smem:[%s36]]
  %s38 = scalar_lea.smem %s0, 19
  %s39 = sld [smem:[%s38]]
  %s40 = scalar_lea.smem %s0, 20
  %s41 = sld [smem:[%s40]]
  %s42 = scalar_lea.smem %s0, 21
  %s43 = sld [smem:[%s42]]
  %s44 = scalar_lea.smem %s0, 22
  %s45 = sld [smem:[%s44]]
  %s46 = scalar_lea.smem %s0, 23
  %s47 = sld [smem:[%s46]]
  %s48 = scalar_lea.smem %s0, 24
  %s49 = sld [smem:[%s48]]
  %s50 = scalar_lea.smem %s0, 25
  %s51 = sld [smem:[%s50]]
  %s52 = scalar_lea.smem %s0, 26
  %s53 = sld [smem:[%s52]]
  %s54 = scalar_lea.smem %s0, 27
  %s55 = sld [smem:[%s54]]
  %s56 = scalar_lea.smem %s0, 28
  %s57 = sld [smem:[%s56]]
  %s58 = scalar_lea.smem %s0, 29
  %s59 = sld [smem:[%s58]]
  %s60 = scalar_lea.smem %s0, 30
  %s61 = sld [smem:[%s60]]
  %62 = xla_tuple %s59, %s61
  %s63 = sld [smem:[#allocation0]]
  $region206: #{graph_transformer_layer.1} parent=0
    _
  %s65 = ssub.s32 1, %s63
  %s66 = scalar_select 0, %s65, %s63
  $region1: #{graph_transformer_layer.1} parent=0
    #allocation2 [shape = 'u8[16384]{0}', space=vmem, size = 0x4000, scoped, tag = 'input window, operand 6, single buffered']
    #allocation3 [shape = 's32[1]{0}', space=sflag, size = 0x4, scoped, tag = 'scoped memory for graph_transformer_layer.1']
    #allocation4 [shape = 's32[1]{0}', space=sflag, size = 0x4, scoped, tag = 'scoped memory for graph_transformer_layer.1']
    #allocation5 [shape = 'u8[2048]{0}', space=vmem, size = 0x800, scoped, tag = 'input window, operand 7, single buffered']
    #allocation6 [shape = 's32[1]{0}', space=sflag, size = 0x4, scoped, tag = 'scoped memory for graph_transformer_layer.1']
    #allocation7 [shape = 'u8[512]{0}', space=vmem, size = 0x400, scoped, tag = 'input window, operand 10, single buffered']
    #allocation8 [shape = 'u8[512]{0}', space=vmem, size = 0x400, scoped, tag = 'input window, operand 11, single buffered']
    #allocation9 [shape = 's32[1]{0}', space=sflag, size = 0x4, scoped, tag = 'scoped memory for graph_transformer_layer.1']
    #allocation10 [shape = 'u8[512]{0}', space=vmem, size = 0x400, scoped, tag = 'input window, operand 12, single buffered']
    #allocation11 [shape = 'u8[16384]{0}', space=vmem, size = 0x4000, scoped, tag = 'input window, operand 13, single buffered']
    #allocation12 [shape = 's32[1]{0}', space=sflag, size = 0x4, scoped, tag = 'scoped memory for graph_transformer_layer.1']
    #allocation13 [shape = 'u8[512]{0}', space=vmem, size = 0x400, scoped, tag = 'input window, operand 14, single buffered']
    #allocation14 [shape = 'u8[512]{0}', space=vmem, size = 0x400, scoped, tag = 'input window, operand 16, single buffered']
    #allocation15 [shape = 's32[1]{0}', space=sflag, size = 0x4, scoped, tag = 'scoped memory for graph_transformer_layer.1']
    #allocation16 [shape = 'u8[512]{0}', space=vmem, size = 0x400, scoped, tag = 'input window, operand 17, single buffered']
    #allocation17 [shape = 'u8[512]{0}', space=vmem, size = 0x400, scoped, tag = 'input window, operand 18, single buffered']
    #allocation18 [shape = 's32[1]{0}', space=sflag, size = 0x4, scoped, tag = 'scoped memory for graph_transformer_layer.1']
    #allocation19 [shape = 'u8[512]{0}', space=vmem, size = 0x400, scoped, tag = 'input window, operand 20, single buffered']
    #allocation20 [shape = 'u8[512]{0}', space=vmem, size = 0x400, scoped, tag = 'input window, operand 21, single buffered']
    #allocation21 [shape = 's32[1]{0}', space=sflag, size = 0x4, scoped, tag = 'scoped memory for graph_transformer_layer.1']
    #allocation22 [shape = 'u8[512]{0}', space=vmem, size = 0x400, scoped, tag = 'input window, operand 22, single buffered']
    #allocation23 [shape = 'u8[16384]{0}', space=vmem, size = 0x4000, scoped, tag = 'input window, operand 23, single buffered']
    #allocation24 [shape = 's32[1]{0}', space=sflag, size = 0x4, scoped, tag = 'scoped memory for graph_transformer_layer.1']
    #allocation25 [shape = 'u8[512]{0}', space=vmem, size = 0x400, scoped, tag = 'input window, operand 24, single buffered']
    #allocation26 [shape = 'u8[512]{0}', space=vmem, size = 0x400, scoped, tag = 'input window, operand 26, single buffered']
    #allocation27 [shape = 's32[1]{0}', space=sflag, size = 0x4, scoped, tag = 'scoped memory for graph_transformer_layer.1']
    #allocation28 [shape = 'u8[512]{0}', space=vmem, size = 0x400, scoped, tag = 'input window, operand 27, single buffered']
    #allocation29 [shape = 'u8[512]{0}', space=vmem, size = 0x400, scoped, tag = 'input window, operand 28, single buffered']
    #allocation30 [shape = 's32[1]{0}', space=sflag, size = 0x4, scoped, tag = 'scoped memory for graph_transformer_layer.1']
    #allocation31 [shape = 'u8[4096]{0}', space=vmem, size = 0x1000, scoped, tag = 'output window, operand 0, single buffered']
    %67 = vsyncpa [#allocation3], 0
    %68 = vsyncpa [#allocation6], 0
    %69 = vsyncpa [#allocation9], 0
    %70 = vsyncpa [#allocation12], 0
    %71 = vsyncpa [#allocation15], 0
    %72 = vsyncpa [#allocation18], 0
    %73 = vsyncpa [#allocation21], 0
    %74 = vsyncpa [#allocation24], 0
    %75 = vsyncpa [#allocation27], 0
    %76 = vsyncpa [#allocation30], 0
    %77 = vsyncpa [#allocation4], 0
    // Predicated region
    $region2: #{graph_transformer_layer.1} parent=1 // pred_check
      _
    $region3: #{graph_transformer_layer.1} parent=1 // pred_check_branch
      %79 = sbr.rel (0) target = $region5
    $region4: #{graph_transformer_layer.1} parent=1 // pred_region
      _
    $region5: #{graph_transformer_layer.1} parent=1 // pred_fallthru
      _
    // Predicated region
    $region6: #{graph_transformer_layer.1} parent=1 // pred_check
      _
    $region7: #{graph_transformer_layer.1} parent=1 // pred_check_branch
      %81 = sbr.rel (0) target = $region9
    $region8: #{graph_transformer_layer.1} parent=1 // pred_region
      _
    $region9: #{graph_transformer_layer.1} parent=1 // pred_fallthru
      _
    // Predicated region
    $region10: #{graph_transformer_layer.1} parent=1 // pred_check
      _
    $region11: #{graph_transformer_layer.1} parent=1 // pred_check_branch
      %83 = sbr.rel (0) target = $region13
    $region12: #{graph_transformer_layer.1} parent=1 // pred_region
      _
    $region13: #{graph_transformer_layer.1} parent=1 // pred_fallthru
      _
    // Predicated region
    $region14: #{graph_transformer_layer.1} parent=1 // pred_check
      _
    $region15: #{graph_transformer_layer.1} parent=1 // pred_check_branch
      %85 = sbr.rel (0) target = $region17
    $region16: #{graph_transformer_layer.1} parent=1 // pred_region
      _
    $region17: #{graph_transformer_layer.1} parent=1 // pred_fallthru
      _
    // Predicated region
    $region18: #{graph_transformer_layer.1} parent=1 // pred_check
      _
    $region19: #{graph_transformer_layer.1} parent=1 // pred_check_branch
      %87 = sbr.rel (0) target = $region21
    $region20: #{graph_transformer_layer.1} parent=1 // pred_region
      _
    $region21: #{graph_transformer_layer.1} parent=1 // pred_fallthru
      _
    // Predicated region
    $region22: #{graph_transformer_layer.1} parent=1 // pred_check
      _
    $region23: #{graph_transformer_layer.1} parent=1 // pred_check_branch
      %89 = sbr.rel (0) target = $region25
    $region24: #{graph_transformer_layer.1} parent=1 // pred_region
      _
    $region25: #{graph_transformer_layer.1} parent=1 // pred_fallthru
      _
    // Predicated region
    $region26: #{graph_transformer_layer.1} parent=1 // pred_check
      _
    $region27: #{graph_transformer_layer.1} parent=1 // pred_check_branch
      %91 = sbr.rel (0) target = $region29
    $region28: #{graph_transformer_layer.1} parent=1 // pred_region
      %s93 = ssub.s32 512, 512
      %94 = vsyncadd [#allocation3], %s93
      %s95 = sshll.u32 [#allocation2], 4
      %s96 = int_to_ptr.vmem [resolvable:$true] %s95
      %101 = dma.hbm_to_vmem [thread:$0]  %s13, 512, %s96, [#allocation3], 128, 128, 8
    $region29: #{graph_transformer_layer.1} parent=1 // pred_fallthru
      _
    // Predicated region
    $region30: #{graph_transformer_layer.1} parent=1 // pred_check
      _
    $region31: #{graph_transformer_layer.1} parent=1 // pred_check_branch
      %103 = sbr.rel (0) target = $region33
    $region32: #{graph_transformer_layer.1} parent=1 // pred_region
      %s105 = ssub.s32 64, 64
      %106 = vsyncadd [#allocation6], %s105
      %s108 = sshll.u32 [#allocation5], 4
      %s109 = int_to_ptr.vmem [resolvable:$true] %s108
      %111 = dma.hbm_to_vmem [thread:$0]  %s15, 64, %s109, [#allocation6]
    $region33: #{graph_transformer_layer.1} parent=1 // pred_fallthru
      _
    // Predicated region
    $region34: #{graph_transformer_layer.1} parent=1 // pred_check
      _
    $region35: #{graph_transformer_layer.1} parent=1 // pred_check_branch
      %113 = sbr.rel (0) target = $region37
    $region36: #{graph_transformer_layer.1} parent=1 // pred_region
      _
    $region37: #{graph_transformer_layer.1} parent=1 // pred_fallthru
      _
    // Predicated region
    $region38: #{graph_transformer_layer.1} parent=1 // pred_check
      _
    $region39: #{graph_transformer_layer.1} parent=1 // pred_check_branch
      %115 = sbr.rel (0) target = $region41
    $region40: #{graph_transformer_layer.1} parent=1 // pred_region
      _
    $region41: #{graph_transformer_layer.1} parent=1 // pred_fallthru
      _
    // Predicated region
    $region42: #{graph_transformer_layer.1} parent=1 // pred_check
      _
    $region43: #{graph_transformer_layer.1} parent=1 // pred_check_branch
      %117 = sbr.rel (0) target = $region45
    $region44: #{graph_transformer_layer.1} parent=1 // pred_region
      %s119 = ssub.s32 16, 16
      %120 = vsyncadd [#allocation6], %s119
      %s122 = sshll.u32 [#allocation7], 4
      %s123 = int_to_ptr.vmem [resolvable:$true] %s122
      %125 = dma.hbm_to_vmem [thread:$0]  %s21, 16, %s123, [#allocation6]
    $region45: #{graph_transformer_layer.1} parent=1 // pred_fallthru
      _
    // Predicated region
    $region46: #{graph_transformer_layer.1} parent=1 // pred_check
      _
    $region47: #{graph_transformer_layer.1} parent=1 // pred_check_branch
      %127 = sbr.rel (0) target = $region49
    $region48: #{graph_transformer_layer.1} parent=1 // pred_region
      %s129 = ssub.s32 16, 16
      %130 = vsyncadd [#allocation9], %s129
      %s132 = sshll.u32 [#allocation8], 4
      %s133 = int_to_ptr.vmem [resolvable:$true] %s132
      %135 = dma.hbm_to_vmem [thread:$0]  %s23, 16, %s133, [#allocation9]
    $region49: #{graph_transformer_layer.1} parent=1 // pred_fallthru
      _
    // Predicated region
    $region50: #{graph_transformer_layer.1} parent=1 // pred_check
      _
    $region51: #{graph_transformer_layer.1} parent=1 // pred_check_branch
      %137 = sbr.rel (0) target = $region53
    $region52: #{graph_transformer_layer.1} parent=1 // pred_region
      %s139 = ssub.s32 16, 16
      %140 = vsyncadd [#allocation9], %s139
      %s142 = sshll.u32 [#allocation10], 4
      %s143 = int_to_ptr.vmem [resolvable:$true] %s142
      %145 = dma.hbm_to_vmem [thread:$0]  %s25, 16, %s143, [#allocation9]
    $region53: #{graph_transformer_layer.1} parent=1 // pred_fallthru
      _
    // Predicated region
    $region54: #{graph_transformer_layer.1} parent=1 // pred_check
      _
    $region55: #{graph_transformer_layer.1} parent=1 // pred_check_branch
      %147 = sbr.rel (0) target = $region57
    $region56: #{graph_transformer_layer.1} parent=1 // pred_region
      %s149 = ssub.s32 512, 512
      %150 = vsyncadd [#allocation12], %s149
      %s151 = sshll.u32 [#allocation11], 4
      %s152 = int_to_ptr.vmem [resolvable:$true] %s151
      %157 = dma.hbm_to_vmem [thread:$0]  %s27, 512, %s152, [#allocation12], 128, 128, 8
    $region57: #{graph_transformer_layer.1} parent=1 // pred_fallthru
      _
    // Predicated region
    $region58: #{graph_transformer_layer.1} parent=1 // pred_check
      _
    $region59: #{graph_transformer_layer.1} parent=1 // pred_check_branch
      %159 = sbr.rel (0) target = $region61
    $region60: #{graph_transformer_layer.1} parent=1 // pred_region
      %s161 = ssub.s32 16, 16
      %162 = vsyncadd [#allocation12], %s161
      %s164 = sshll.u32 [#allocation13], 4
      %s165 = int_to_ptr.vmem [resolvable:$true] %s164
      %167 = dma.hbm_to_vmem [thread:$0]  %s29, 16, %s165, [#allocation12]
    $region61: #{graph_transformer_layer.1} parent=1 // pred_fallthru
      _
    // Predicated region
    $region62: #{graph_transformer_layer.1} parent=1 // pred_check
      _
    $region63: #{graph_transformer_layer.1} parent=1 // pred_check_branch
      %169 = sbr.rel (0) target = $region65
    $region64: #{graph_transformer_layer.1} parent=1 // pred_region
      _
    $region65: #{graph_transformer_layer.1} parent=1 // pred_fallthru
      _
    // Predicated region
    $region66: #{graph_transformer_layer.1} parent=1 // pred_check
      _
    $region67: #{graph_transformer_layer.1} parent=1 // pred_check_branch
      %171 = sbr.rel (0) target = $region69
    $region68: #{graph_transformer_layer.1} parent=1 // pred_region
      %s173 = ssub.s32 16, 16
      %174 = vsyncadd [#allocation15], %s173
      %s176 = sshll.u32 [#allocation14], 4
      %s177 = int_to_ptr.vmem [resolvable:$true] %s176
      %179 = dma.hbm_to_vmem [thread:$0]  %s33, 16, %s177, [#allocation15]
    $region69: #{graph_transformer_layer.1} parent=1 // pred_fallthru
      _
    // Predicated region
    $region70: #{graph_transformer_layer.1} parent=1 // pred_check
      _
    $region71: #{graph_transformer_layer.1} parent=1 // pred_check_branch
      %181 = sbr.rel (0) target = $region73
    $region72: #{graph_transformer_layer.1} parent=1 // pred_region
      %s183 = ssub.s32 16, 16
      %184 = vsyncadd [#allocation15], %s183
      %s186 = sshll.u32 [#allocation16], 4
      %s187 = int_to_ptr.vmem [resolvable:$true] %s186
      %189 = dma.hbm_to_vmem [thread:$0]  %s35, 16, %s187, [#allocation15]
    $region73: #{graph_transformer_layer.1} parent=1 // pred_fallthru
      _
    // Predicated region
    $region74: #{graph_transformer_layer.1} parent=1 // pred_check
      _
    $region75: #{graph_transformer_layer.1} parent=1 // pred_check_branch
      %191 = sbr.rel (0) target = $region77
    $region76: #{graph_transformer_layer.1} parent=1 // pred_region
      %s193 = ssub.s32 16, 16
      %194 = vsyncadd [#allocation18], %s193
      %s196 = sshll.u32 [#allocation17], 4
      %s197 = int_to_ptr.vmem [resolvable:$true] %s196
      %199 = dma.hbm_to_vmem [thread:$0]  %s37, 16, %s197, [#allocation18]
    $region77: #{graph_transformer_layer.1} parent=1 // pred_fallthru
      _
    // Predicated region
    $region78: #{graph_transformer_layer.1} parent=1 // pred_check
      _
    $region79: #{graph_transformer_layer.1} parent=1 // pred_check_branch
      %201 = sbr.rel (0) target = $region81
    $region80: #{graph_transformer_layer.1} parent=1 // pred_region
      _
    $region81: #{graph_transformer_layer.1} parent=1 // pred_fallthru
      _
    // Predicated region
    $region82: #{graph_transformer_layer.1} parent=1 // pred_check
      _
    $region83: #{graph_transformer_layer.1} parent=1 // pred_check_branch
      %203 = sbr.rel (0) target = $region85
    $region84: #{graph_transformer_layer.1} parent=1 // pred_region
      %s205 = ssub.s32 16, 16
      %206 = vsyncadd [#allocation18], %s205
      %s208 = sshll.u32 [#allocation19], 4
      %s209 = int_to_ptr.vmem [resolvable:$true] %s208
      %211 = dma.hbm_to_vmem [thread:$0]  %s41, 16, %s209, [#allocation18]
    $region85: #{graph_transformer_layer.1} parent=1 // pred_fallthru
      _
    // Predicated region
    $region86: #{graph_transformer_layer.1} parent=1 // pred_check
      _
    $region87: #{graph_transformer_layer.1} parent=1 // pred_check_branch
      %213 = sbr.rel (0) target = $region89
    $region88: #{graph_transformer_layer.1} parent=1 // pred_region
      %s215 = ssub.s32 16, 16
      %216 = vsyncadd [#allocation21], %s215
      %s218 = sshll.u32 [#allocation20], 4
      %s219 = int_to_ptr.vmem [resolvable:$true] %s218
      %221 = dma.hbm_to_vmem [thread:$0]  %s43, 16, %s219, [#allocation21]
    $region89: #{graph_transformer_layer.1} parent=1 // pred_fallthru
      _
    // Predicated region
    $region90: #{graph_transformer_layer.1} parent=1 // pred_check
      _
    $region91: #{graph_transformer_layer.1} parent=1 // pred_check_branch
      %223 = sbr.rel (0) target = $region93
    $region92: #{graph_transformer_layer.1} parent=1 // pred_region
      %s225 = ssub.s32 16, 16
      %226 = vsyncadd [#allocation21], %s225
      %s228 = sshll.u32 [#allocation22], 4
      %s229 = int_to_ptr.vmem [resolvable:$true] %s228
      %231 = dma.hbm_to_vmem [thread:$0]  %s45, 16, %s229, [#allocation21]
    $region93: #{graph_transformer_layer.1} parent=1 // pred_fallthru
      _
    // Predicated region
    $region94: #{graph_transformer_layer.1} parent=1 // pred_check
      _
    $region95: #{graph_transformer_layer.1} parent=1 // pred_check_branch
      %233 = sbr.rel (0) target = $region97
    $region96: #{graph_transformer_layer.1} parent=1 // pred_region
      %s235 = ssub.s32 512, 512
      %236 = vsyncadd [#allocation24], %s235
      %s237 = sshll.u32 [#allocation23], 4
      %s238 = int_to_ptr.vmem [resolvable:$true] %s237
      %243 = dma.hbm_to_vmem [thread:$0]  %s47, 512, %s238, [#allocation24], 128, 128, 8
    $region97: #{graph_transformer_layer.1} parent=1 // pred_fallthru
      _
    // Predicated region
    $region98: #{graph_transformer_layer.1} parent=1 // pred_check
      _
    $region99: #{graph_transformer_layer.1} parent=1 // pred_check_branch
      %245 = sbr.rel (0) target = $region101
    $region100: #{graph_transformer_layer.1} parent=1 // pred_region
      %s247 = ssub.s32 16, 16
      %248 = vsyncadd [#allocation24], %s247
      %s250 = sshll.u32 [#allocation25], 4
      %s251 = int_to_ptr.vmem [resolvable:$true] %s250
      %253 = dma.hbm_to_vmem [thread:$0]  %s49, 16, %s251, [#allocation24]
    $region101: #{graph_transformer_layer.1} parent=1 // pred_fallthru
      _
    // Predicated region
    $region102: #{graph_transformer_layer.1} parent=1 // pred_check
      _
    $region103: #{graph_transformer_layer.1} parent=1 // pred_check_branch
      %255 = sbr.rel (0) target = $region105
    $region104: #{graph_transformer_layer.1} parent=1 // pred_region
      _
    $region105: #{graph_transformer_layer.1} parent=1 // pred_fallthru
      _
    // Predicated region
    $region106: #{graph_transformer_layer.1} parent=1 // pred_check
      _
    $region107: #{graph_transformer_layer.1} parent=1 // pred_check_branch
      %257 = sbr.rel (0) target = $region109
    $region108: #{graph_transformer_layer.1} parent=1 // pred_region
      %s259 = ssub.s32 16, 16
      %260 = vsyncadd [#allocation27], %s259
      %s262 = sshll.u32 [#allocation26], 4
      %s263 = int_to_ptr.vmem [resolvable:$true] %s262
      %265 = dma.hbm_to_vmem [thread:$0]  %s53, 16, %s263, [#allocation27]
    $region109: #{graph_transformer_layer.1} parent=1 // pred_fallthru
      _
    // Predicated region
    $region110: #{graph_transformer_layer.1} parent=1 // pred_check
      _
    $region111: #{graph_transformer_layer.1} parent=1 // pred_check_branch
      %267 = sbr.rel (0) target = $region113
    $region112: #{graph_transformer_layer.1} parent=1 // pred_region
      %s269 = ssub.s32 16, 16
      %270 = vsyncadd [#allocation27], %s269
      %s272 = sshll.u32 [#allocation28], 4
      %s273 = int_to_ptr.vmem [resolvable:$true] %s272
      %275 = dma.hbm_to_vmem [thread:$0]  %s55, 16, %s273, [#allocation27]
    $region113: #{graph_transformer_layer.1} parent=1 // pred_fallthru
      _
    // Predicated region
    $region114: #{graph_transformer_layer.1} parent=1 // pred_check
      _
    $region115: #{graph_transformer_layer.1} parent=1 // pred_check_branch
      %277 = sbr.rel (0) target = $region117
    $region116: #{graph_transformer_layer.1} parent=1 // pred_region
      %s279 = ssub.s32 16, 16
      %280 = vsyncadd [#allocation30], %s279
      %s282 = sshll.u32 [#allocation29], 4
      %s283 = int_to_ptr.vmem [resolvable:$true] %s282
      %285 = dma.hbm_to_vmem [thread:$0]  %s57, 16, %s283, [#allocation30]
    $region117: #{graph_transformer_layer.1} parent=1 // pred_fallthru
      _
    // Predicated region
    $region118: #{graph_transformer_layer.1} parent=1 // pred_check
      _
    $region119: #{graph_transformer_layer.1} parent=1 // pred_check_branch
      %287 = sbr.rel (0) target = $region121
    $region120: #{graph_transformer_layer.1} parent=1 // pred_region
      %288 = dma.done [#allocation3], 512
    $region121: #{graph_transformer_layer.1} parent=1 // pred_fallthru
      _
    // Predicated region
    $region122: #{graph_transformer_layer.1} parent=1 // pred_check
      _
    $region123: #{graph_transformer_layer.1} parent=1 // pred_check_branch
      %290 = sbr.rel (0) target = $region125
    $region124: #{graph_transformer_layer.1} parent=1 // pred_region
      %291 = dma.done [#allocation6], 64
    $region125: #{graph_transformer_layer.1} parent=1 // pred_fallthru
      _
    // Predicated region
    $region126: #{graph_transformer_layer.1} parent=1 // pred_check
      _
    $region127: #{graph_transformer_layer.1} parent=1 // pred_check_branch
      %293 = sbr.rel (0) target = $region129
    $region128: #{graph_transformer_layer.1} parent=1 // pred_region
      %294 = dma.done [#allocation6], 16
    $region129: #{graph_transformer_layer.1} parent=1 // pred_fallthru
      _
    // Predicated region
    $region130: #{graph_transformer_layer.1} parent=1 // pred_check
      _
    $region131: #{graph_transformer_layer.1} parent=1 // pred_check_branch
      %296 = sbr.rel (0) target = $region133
    $region132: #{graph_transformer_layer.1} parent=1 // pred_region
      %297 = dma.done [#allocation9], 16
    $region133: #{graph_transformer_layer.1} parent=1 // pred_fallthru
      _
    // Predicated region
    $region134: #{graph_transformer_layer.1} parent=1 // pred_check
      _
    $region135: #{graph_transformer_layer.1} parent=1 // pred_check_branch
      %299 = sbr.rel (0) target = $region137
    $region136: #{graph_transformer_layer.1} parent=1 // pred_region
      %300 = dma.done [#allocation9], 16
    $region137: #{graph_transformer_layer.1} parent=1 // pred_fallthru
      _
    // Predicated region
    $region138: #{graph_transformer_layer.1} parent=1 // pred_check
      _
    $region139: #{graph_transformer_layer.1} parent=1 // pred_check_branch
      %302 = sbr.rel (0) target = $region141
    $region140: #{graph_transformer_layer.1} parent=1 // pred_region
      %303 = dma.done [#allocation12], 512
    $region141: #{graph_transformer_layer.1} parent=1 // pred_fallthru
      _
    // Predicated region
    $region142: #{graph_transformer_layer.1} parent=1 // pred_check
      _
    $region143: #{graph_transformer_layer.1} parent=1 // pred_check_branch
      %305 = sbr.rel (0) target = $region145
    $region144: #{graph_transformer_layer.1} parent=1 // pred_region
      %306 = dma.done [#allocation12], 16
    $region145: #{graph_transformer_layer.1} parent=1 // pred_fallthru
      _
    // Predicated region
    $region146: #{graph_transformer_layer.1} parent=1 // pred_check
      _
    $region147: #{graph_transformer_layer.1} parent=1 // pred_check_branch
      %308 = sbr.rel (0) target = $region149
    $region148: #{graph_transformer_layer.1} parent=1 // pred_region
      %309 = dma.done [#allocation15], 16
    $region149: #{graph_transformer_layer.1} parent=1 // pred_fallthru
      _
    // Predicated region
    $region150: #{graph_transformer_layer.1} parent=1 // pred_check
      _
    $region151: #{graph_transformer_layer.1} parent=1 // pred_check_branch
      %311 = sbr.rel (0) target = $region153
    $region152: #{graph_transformer_layer.1} parent=1 // pred_region
      %312 = dma.done [#allocation15], 16
    $region153: #{graph_transformer_layer.1} parent=1 // pred_fallthru
      _
    // Predicated region
    $region154: #{graph_transformer_layer.1} parent=1 // pred_check
      _
    $region155: #{graph_transformer_layer.1} parent=1 // pred_check_branch
      %314 = sbr.rel (0) target = $region157
    $region156: #{graph_transformer_layer.1} parent=1 // pred_region
      %315 = dma.done [#allocation18], 16
    $region157: #{graph_transformer_layer.1} parent=1 // pred_fallthru
      _
    // Predicated region
    $region158: #{graph_transformer_layer.1} parent=1 // pred_check
      _
    $region159: #{graph_transformer_layer.1} parent=1 // pred_check_branch
      %317 = sbr.rel (0) target = $region161
    $region160: #{graph_transformer_layer.1} parent=1 // pred_region
      %318 = dma.done [#allocation18], 16
    $region161: #{graph_transformer_layer.1} parent=1 // pred_fallthru
      _
    // Predicated region
    $region162: #{graph_transformer_layer.1} parent=1 // pred_check
      _
    $region163: #{graph_transformer_layer.1} parent=1 // pred_check_branch
      %320 = sbr.rel (0) target = $region165
    $region164: #{graph_transformer_layer.1} parent=1 // pred_region
      %321 = dma.done [#allocation21], 16
    $region165: #{graph_transformer_layer.1} parent=1 // pred_fallthru
      _
    // Predicated region
    $region166: #{graph_transformer_layer.1} parent=1 // pred_check
      _
    $region167: #{graph_transformer_layer.1} parent=1 // pred_check_branch
      %323 = sbr.rel (0) target = $region169
    $region168: #{graph_transformer_layer.1} parent=1 // pred_region
      %324 = dma.done [#allocation21], 16
    $region169: #{graph_transformer_layer.1} parent=1 // pred_fallthru
      _
    // Predicated region
    $region170: #{graph_transformer_layer.1} parent=1 // pred_check
      _
    $region171: #{graph_transformer_layer.1} parent=1 // pred_check_branch
      %326 = sbr.rel (0) target = $region173
    $region172: #{graph_transformer_layer.1} parent=1 // pred_region
      %327 = dma.done [#allocation24], 512
    $region173: #{graph_transformer_layer.1} parent=1 // pred_fallthru
      _
    // Predicated region
    $region174: #{graph_transformer_layer.1} parent=1 // pred_check
      _
    $region175: #{graph_transformer_layer.1} parent=1 // pred_check_branch
      %329 = sbr.rel (0) target = $region177
    $region176: #{graph_transformer_layer.1} parent=1 // pred_region
      %330 = dma.done [#allocation24], 16
    $region177: #{graph_transformer_layer.1} parent=1 // pred_fallthru
      _
    // Predicated region
    $region178: #{graph_transformer_layer.1} parent=1 // pred_check
      _
    $region179: #{graph_transformer_layer.1} parent=1 // pred_check_branch
      %332 = sbr.rel (0) target = $region181
    $region180: #{graph_transformer_layer.1} parent=1 // pred_region
      %333 = dma.done [#allocation27], 16
    $region181: #{graph_transformer_layer.1} parent=1 // pred_fallthru
      _
    // Predicated region
    $region182: #{graph_transformer_layer.1} parent=1 // pred_check
      _
    $region183: #{graph_transformer_layer.1} parent=1 // pred_check_branch
      %335 = sbr.rel (0) target = $region185
    $region184: #{graph_transformer_layer.1} parent=1 // pred_region
      %336 = dma.done [#allocation27], 16
    $region185: #{graph_transformer_layer.1} parent=1 // pred_fallthru
      _
    // Predicated region
    $region186: #{graph_transformer_layer.1} parent=1 // pred_check
      _
    $region187: #{graph_transformer_layer.1} parent=1 // pred_check_branch
      %338 = sbr.rel (0) target = $region189
    $region188: #{graph_transformer_layer.1} parent=1 // pred_region
      %339 = dma.done [#allocation30], 16
    $region189: #{graph_transformer_layer.1} parent=1 // pred_fallthru
      _
    %v340 = vld [vmem:[%s1] sm:$0xff]
    %v341 = vld [vmem:[%s3] sm:$0xff]
    %v342 = vld [vmem:[%s3 + $0x8] sm:$0xff]
    %v343 = vld [vmem:[%s3 + $0x10] sm:$0xff]
    %v344 = vld [vmem:[%s3 + $0x18] sm:$0xff]
    %v345 = vld [vmem:[%s3 + $0x20] sm:$0xff]
    %v346 = vld [vmem:[%s3 + $0x28] sm:$0xff]
    %v347 = vld [vmem:[%s3 + $0x30] sm:$0xff]
    %v348 = vld [vmem:[%s3 + $0x38] sm:$0xff]
    %v349 = vld [vmem:[%s5] sm:$0xff]
    %v350 = vld [vmem:[%s5 + $0x8] sm:$0xff]
    %v351 = vld [vmem:[%s5 + $0x10] sm:$0xff]
    %v352 = vld [vmem:[%s5 + $0x18] sm:$0xff]
    %vm353 = vcmask 261120
    %v355 = vsel %vm353, %v340, 0
    %357 = vmatprep.subr.mxu0 0.0
    %358 = vmatpush1.msra.mxu0 0.0
    %359 = vmatprep.subr.mxu0 0.0
    %360 = vmatpush1.msra.mxu0 0.0
    %361 = vmatprep.subr.mxu0 0.0
    %362 = vmatpush1.msra.mxu0 0.0
    %363 = vmatprep.subr.mxu0 0.0
    %364 = vmatpush1.msra.mxu0 0.0
    %365 = vmatprep.subr.mxu0 0.0
    %366 = vmatpush1.msra.mxu0 0.0
    %367 = vmatprep.subr.mxu0 0.0
    %368 = vmatpush1.msra.mxu0 0.0
    %369 = vmatprep.subr.mxu0 0.0
    %370 = vmatpush1.msra.mxu0 0.0
    %371 = vmatprep.subr.mxu0 0.0
    %372 = vmatpush1.msra.mxu0 0.0
    %373 = vmatprep.subr.mxu0 0.0
    %374 = vmatpush1.msra.mxu0 0.0
    %375 = vmatprep.subr.mxu0 0.0
    %376 = vmatpush1.msra.mxu0 0.0
    %377 = vmatprep.subr.mxu0 0.0
    %378 = vmatpush1.msra.mxu0 0.0
    %379 = vmatprep.subr.mxu0 0.0
    %380 = vmatpush1.msra.mxu0 0.0
    %381 = vmatprep.subr.mxu0 0.0
    %382 = vmatpush1.msra.mxu0 %v352
    %383 = vmatprep.subr.mxu0 0.0
    %384 = vmatpush1.msra.mxu0 %v351
    %385 = vmatprep.subr.mxu0 0.0
    %386 = vmatpush1.msra.mxu0 %v350
    %387 = vmatprep.subr.mxu0 0.0
    %388 = vmatpush1.msra.mxu0 %v349
    %389 = vmatprep.subr.mxu0 0.0
    %390 = vmatpush2.msra.mxu0 0.0
    %391 = vmatprep.subr.mxu0 0.0
    %392 = vmatpush2.msra.mxu0 0.0
    %393 = vmatprep.subr.mxu0 0.0
    %394 = vmatpush2.msra.mxu0 0.0
    %395 = vmatprep.subr.mxu0 0.0
    %396 = vmatpush2.msra.mxu0 0.0
    %397 = vmatprep.subr.mxu0 0.0
    %398 = vmatpush2.msra.mxu0 0.0
    %399 = vmatprep.subr.mxu0 0.0
    %400 = vmatpush2.msra.mxu0 0.0
    %401 = vmatprep.subr.mxu0 0.0
    %402 = vmatpush2.msra.mxu0 0.0
    %403 = vmatprep.subr.mxu0 0.0
    %404 = vmatpush2.msra.mxu0 0.0
    %405 = vmatprep.subr.mxu0 0.0
    %406 = vmatpush2.msra.mxu0 0.0
    %407 = vmatprep.subr.mxu0 0.0
    %408 = vmatpush2.msra.mxu0 0.0
    %409 = vmatprep.subr.mxu0 0.0
    %410 = vmatpush2.msra.mxu0 0.0
    %411 = vmatprep.subr.mxu0 0.0
    %412 = vmatpush2.msra.mxu0 0.0
    %413 = vmatprep.subr.mxu0 0.0
    %414 = vmatpush2.msra.mxu0 0.0
    %415 = vmatprep.subr.mxu0 0.0
    %416 = vmatpush2.msra.mxu0 0.0
    %417 = vmatprep.subr.mxu0 0.0
    %418 = vmatpush2.msra.mxu0 0.0
    %419 = vmatprep.subr.mxu0 0.0
    %420 = vmatpush2.msra.mxu0 0.0
    %421 = vmatprep.mubr.f32.mxu0 0.0
    %422 = vmatmul.mubr.f32.gmra.mxu0 %v355
    %v423 = vpop.f32.mrf.mxu0
    %v424 = vadd.f32 0.0, %v423
    %v425 = vpop.f32.mrf.mxu0
    %426 = vdwg.mxu0
    %v427 = vld [vmem:[%s7] sm:$0xff]
    %v428 = vld [vmem:[%s7 + $0x8] sm:$0xff]
    %v429 = vld [vmem:[%s7 + $0x10] sm:$0xff]
    %v430 = vld [vmem:[%s7 + $0x18] sm:$0xff]
    %v432 = vsel %vm353, %v341, 0
    %v435 = vsel %vm353, %v342, 0
    %v438 = vsel %vm353, %v343, 0
    %v441 = vsel %vm353, %v344, 0
    %v444 = vsel %vm353, %v345, 0
    %v447 = vsel %vm353, %v346, 0
    %v450 = vsel %vm353, %v347, 0
    %v453 = vsel %vm353, %v348, 0
    %455 = vmatprep.subr.mxu0 0.0
    %456 = vmatpush1.msra.mxu0 0.0
    %457 = vmatprep.subr.mxu0 0.0
    %458 = vmatpush1.msra.mxu0 0.0
    %459 = vmatprep.subr.mxu0 0.0
    %460 = vmatpush1.msra.mxu0 0.0
    %461 = vmatprep.subr.mxu0 0.0
    %462 = vmatpush1.msra.mxu0 0.0
    %463 = vmatprep.subr.mxu0 0.0
    %464 = vmatpush1.msra.mxu0 0.0
    %465 = vmatprep.subr.mxu0 0.0
    %466 = vmatpush1.msra.mxu0 0.0
    %467 = vmatprep.subr.mxu0 0.0
    %468 = vmatpush1.msra.mxu0 0.0
    %469 = vmatprep.subr.mxu0 0.0
    %470 = vmatpush1.msra.mxu0 0.0
    %471 = vmatprep.subr.mxu0 0.0
    %472 = vmatpush1.msra.mxu0 0.0
    %473 = vmatprep.subr.mxu0 0.0
    %474 = vmatpush1.msra.mxu0 0.0
    %475 = vmatprep.subr.mxu0 0.0
    %476 = vmatpush1.msra.mxu0 0.0
    %477 = vmatprep.subr.mxu0 0.0
    %478 = vmatpush1.msra.mxu0 0.0
    %479 = vmatprep.subr.mxu0 0.0
    %480 = vmatpush1.msra.mxu0 %v430
    %481 = vmatprep.subr.mxu0 0.0
    %482 = vmatpush1.msra.mxu0 %v429
    %483 = vmatprep.subr.mxu0 0.0
    %484 = vmatpush1.msra.mxu0 %v428
    %485 = vmatprep.subr.mxu0 0.0
    %486 = vmatpush1.msra.mxu0 %v427
    %487 = vmatprep.subr.mxu0 0.0
    %488 = vmatpush2.msra.mxu0 0.0
    %489 = vmatprep.subr.mxu0 0.0
    %490 = vmatpush2.msra.mxu0 0.0
    %491 = vmatprep.subr.mxu0 0.0
    %492 = vmatpush2.msra.mxu0 0.0
    %493 = vmatprep.subr.mxu0 0.0
    %494 = vmatpush2.msra.mxu0 0.0
    %495 = vmatprep.subr.mxu0 0.0
    %496 = vmatpush2.msra.mxu0 0.0
    %497 = vmatprep.subr.mxu0 0.0
    %498 = vmatpush2.msra.mxu0 0.0
    %499 = vmatprep.subr.mxu0 0.0
    %500 = vmatpush2.msra.mxu0 0.0
    %501 = vmatprep.subr.mxu0 0.0
    %502 = vmatpush2.msra.mxu0 0.0
    %503 = vmatprep.subr.mxu0 0.0
    %504 = vmatpush2.msra.mxu0 0.0
    %505 = vmatprep.subr.mxu0 0.0
    %506 = vmatpush2.msra.mxu0 0.0
    %507 = vmatprep.subr.mxu0 0.0
    %508 = vmatpush2.msra.mxu0 0.0
    %509 = vmatprep.subr.mxu0 0.0
    %510 = vmatpush2.msra.mxu0 0.0
    %511 = vmatprep.subr.mxu0 0.0
    %512 = vmatpush2.msra.mxu0 0.0
    %513 = vmatprep.subr.mxu0 0.0
    %514 = vmatpush2.msra.mxu0 0.0
    %515 = vmatprep.subr.mxu0 0.0
    %516 = vmatpush2.msra.mxu0 0.0
    %517 = vmatprep.subr.mxu0 0.0
    %518 = vmatpush2.msra.mxu0 0.0
    %519 = vmatprep.mubr.f32.mxu0 0.0
    %520 = vmatmul.mubr.f32.gmra.mxu0 %v432
    %v521 = vpop.f32.mrf.mxu0
    %v522 = vadd.f32 0.0, %v521
    %v523 = vpop.f32.mrf.mxu0
    %524 = vmatprep.mubr.f32.mxu0 0.0
    %525 = vmatmul.mubr.f32.gmra.mxu0 %v435
    %v526 = vpop.f32.mrf.mxu0
    %v527 = vadd.f32 0.0, %v526
    %v528 = vpop.f32.mrf.mxu0
    %529 = vmatprep.mubr.f32.mxu0 0.0
    %530 = vmatmul.mubr.f32.gmra.mxu0 %v438
    %v531 = vpop.f32.mrf.mxu0
    %v532 = vadd.f32 0.0, %v531
    %v533 = vpop.f32.mrf.mxu0
    %534 = vmatprep.mubr.f32.mxu0 0.0
    %535 = vmatmul.mubr.f32.gmra.mxu0 %v441
    %v536 = vpop.f32.mrf.mxu0
    %v537 = vadd.f32 0.0, %v536
    %v538 = vpop.f32.mrf.mxu0
    %539 = vmatprep.mubr.f32.mxu0 0.0
    %540 = vmatmul.mubr.f32.gmra.mxu0 %v444
    %v541 = vpop.f32.mrf.mxu0
    %v542 = vadd.f32 0.0, %v541
    %v543 = vpop.f32.mrf.mxu0
    %544 = vmatprep.mubr.f32.mxu0 0.0
    %545 = vmatmul.mubr.f32.gmra.mxu0 %v447
    %v546 = vpop.f32.mrf.mxu0
    %v547 = vadd.f32 0.0, %v546
    %v548 = vpop.f32.mrf.mxu0
    %549 = vmatprep.mubr.f32.mxu0 0.0
    %550 = vmatmul.mubr.f32.gmra.mxu0 %v450
    %v551 = vpop.f32.mrf.mxu0
    %v552 = vadd.f32 0.0, %v551
    %v553 = vpop.f32.mrf.mxu0
    %554 = vmatprep.mubr.f32.mxu0 0.0
    %555 = vmatmul.mubr.f32.gmra.mxu0 %v453
    %v556 = vpop.f32.mrf.mxu0
    %v557 = vadd.f32 0.0, %v556
    %v558 = vpop.f32.mrf.mxu0
    %559 = vdwg.mxu0
    %v560 = vld [vmem:[%s9] sm:$0xff]
    %v561 = vld [vmem:[%s9 + $0x8] sm:$0xff]
    %v562 = vld [vmem:[%s9 + $0x10] sm:$0xff]
    %v563 = vld [vmem:[%s9 + $0x18] sm:$0xff]
    %v564 = vld [vmem:[%s9 + $0x20] sm:$0xff]
    %v565 = vld [vmem:[%s9 + $0x28] sm:$0xff]
    %v566 = vld [vmem:[%s9 + $0x30] sm:$0xff]
    %v567 = vld [vmem:[%s9 + $0x38] sm:$0xff]
    %vm568 = vcmask 64512
    %v570 = vsel %vm568, %v560, 0
    %v573 = vsel %vm568, %v561, 0
    %v576 = vsel %vm568, %v562, 0
    %v579 = vsel %vm568, %v563, 0
    %v582 = vsel %vm568, %v564, 0
    %v585 = vsel %vm568, %v565, 0
    %v588 = vsel %vm568, %v566, 0
    %v591 = vsel %vm568, %v567, 0
    %593 = vmatprep.subr.mxu0 0.0
    %594 = vmatpush1.msra.mxu0 0.0
    %595 = vmatprep.subr.mxu0 0.0
    %596 = vmatpush1.msra.mxu0 0.0
    %597 = vmatprep.subr.mxu0 0.0
    %598 = vmatpush1.msra.mxu0 0.0
    %599 = vmatprep.subr.mxu0 0.0
    %600 = vmatpush1.msra.mxu0 0.0
    %601 = vmatprep.subr.mxu0 0.0
    %602 = vmatpush1.msra.mxu0 0.0
    %603 = vmatprep.subr.mxu0 0.0
    %604 = vmatpush1.msra.mxu0 0.0
    %605 = vmatprep.subr.mxu0 0.0
    %606 = vmatpush1.msra.mxu0 0.0
    %607 = vmatprep.subr.mxu0 0.0
    %608 = vmatpush1.msra.mxu0 0.0
    %609 = vmatprep.subr.mxu0 0.0
    %610 = vmatpush1.msra.mxu0 0.0
    %611 = vmatprep.subr.mxu0 0.0
    %612 = vmatpush1.msra.mxu0 0.0
    %613 = vmatprep.subr.mxu0 0.0
    %614 = vmatpush1.msra.mxu0 0.0
    %615 = vmatprep.subr.mxu0 0.0
    %616 = vmatpush1.msra.mxu0 0.0
    %617 = vmatprep.subr.mxu0 0.0
    %618 = vmatpush1.msra.mxu0 0.0
    %619 = vmatprep.subr.mxu0 0.0
    %620 = vmatpush1.msra.mxu0 0.0
    %621 = vmatprep.subr.mxu0 0.0
    %622 = vmatpush1.msra.mxu0 0.0
    %623 = vmatprep.subr.mxu0 0.0
    %624 = vmatpush1.msra.mxu0 %v424
    %625 = vmatprep.subr.mxu0 0.0
    %626 = vmatpush2.msra.mxu0 0.0
    %627 = vmatprep.subr.mxu0 0.0
    %628 = vmatpush2.msra.mxu0 0.0
    %629 = vmatprep.subr.mxu0 0.0
    %630 = vmatpush2.msra.mxu0 0.0
    %631 = vmatprep.subr.mxu0 0.0
    %632 = vmatpush2.msra.mxu0 0.0
    %633 = vmatprep.subr.mxu0 0.0
    %634 = vmatpush2.msra.mxu0 0.0
    %635 = vmatprep.subr.mxu0 0.0
    %636 = vmatpush2.msra.mxu0 0.0
    %637 = vmatprep.subr.mxu0 0.0
    %638 = vmatpush2.msra.mxu0 0.0
    %639 = vmatprep.subr.mxu0 0.0
    %640 = vmatpush2.msra.mxu0 0.0
    %641 = vmatprep.subr.mxu0 0.0
    %642 = vmatpush2.msra.mxu0 0.0
    %643 = vmatprep.subr.mxu0 0.0
    %644 = vmatpush2.msra.mxu0 0.0
    %645 = vmatprep.subr.mxu0 0.0
    %646 = vmatpush2.msra.mxu0 0.0
    %647 = vmatprep.subr.mxu0 0.0
    %648 = vmatpush2.msra.mxu0 0.0
    %649 = vmatprep.subr.mxu0 0.0
    %650 = vmatpush2.msra.mxu0 0.0
    %651 = vmatprep.subr.mxu0 0.0
    %652 = vmatpush2.msra.mxu0 0.0
    %653 = vmatprep.subr.mxu0 0.0
    %654 = vmatpush2.msra.mxu0 0.0
    %655 = vmatprep.subr.mxu0 0.0
    %656 = vmatpush2.msra.mxu0 0.0
    %657 = vmatprep.mubr.f32.mxu0 0.0
    %658 = vmatmul.mubr.f32.gmra.mxu0 %v570
    %v659 = vpop.f32.mrf.mxu0
    %v660 = vadd.f32 0.0, %v659
    %v661 = vpop.f32.mrf.mxu0
    %662 = vmatprep.mubr.f32.mxu0 0.0
    %663 = vmatmul.mubr.f32.gmra.mxu0 %v573
    %v664 = vpop.f32.mrf.mxu0
    %v665 = vadd.f32 0.0, %v664
    %v666 = vpop.f32.mrf.mxu0
    %667 = vmatprep.mubr.f32.mxu0 0.0
    %668 = vmatmul.mubr.f32.gmra.mxu0 %v576
    %v669 = vpop.f32.mrf.mxu0
    %v670 = vadd.f32 0.0, %v669
    %v671 = vpop.f32.mrf.mxu0
    %672 = vmatprep.mubr.f32.mxu0 0.0
    %673 = vmatmul.mubr.f32.gmra.mxu0 %v579
    %v674 = vpop.f32.mrf.mxu0
    %v675 = vadd.f32 0.0, %v674
    %v676 = vpop.f32.mrf.mxu0
    %677 = vmatprep.mubr.f32.mxu0 0.0
    %678 = vmatmul.mubr.f32.gmra.mxu0 %v582
    %v679 = vpop.f32.mrf.mxu0
    %v680 = vadd.f32 0.0, %v679
    %v681 = vpop.f32.mrf.mxu0
    %682 = vmatprep.mubr.f32.mxu0 0.0
    %683 = vmatmul.mubr.f32.gmra.mxu0 %v585
    %v684 = vpop.f32.mrf.mxu0
    %v685 = vadd.f32 0.0, %v684
    %v686 = vpop.f32.mrf.mxu0
    %687 = vmatprep.mubr.f32.mxu0 0.0
    %688 = vmatmul.mubr.f32.gmra.mxu0 %v588
    %v689 = vpop.f32.mrf.mxu0
    %v690 = vadd.f32 0.0, %v689
    %v691 = vpop.f32.mrf.mxu0
    %692 = vmatprep.mubr.f32.mxu0 0.0
    %693 = vmatmul.mubr.f32.gmra.mxu0 %v591
    %v694 = vpop.f32.mrf.mxu0
    %v695 = vadd.f32 0.0, %v694
    %v696 = vpop.f32.mrf.mxu0
    %697 = vdwg.mxu0
    %v698 = vld [vmem:[%s11] sm:$0xff]
    %v699 = vld [vmem:[%s11 + $0x8] sm:$0xff]
    %v700 = vld [vmem:[%s11 + $0x10] sm:$0xff]
    %v701 = vld [vmem:[%s11 + $0x18] sm:$0xff]
    %v702 = vld [vmem:[%s11 + $0x20] sm:$0xff]
    %v703 = vld [vmem:[%s11 + $0x28] sm:$0xff]
    %v704 = vld [vmem:[%s11 + $0x30] sm:$0xff]
    %v705 = vld [vmem:[%s11 + $0x38] sm:$0xff]
    %707 = vrot.lane.b32.xlu0 %v424, 96
    %v708 = vpop.permute.xlu0 %707
    %v711 = vsel %vm568, %v698, 0
    %v714 = vsel %vm568, %v699, 0
    %v717 = vsel %vm568, %v700, 0
    %v720 = vsel %vm568, %v701, 0
    %v723 = vsel %vm568, %v702, 0
    %v726 = vsel %vm568, %v703, 0
    %v729 = vsel %vm568, %v704, 0
    %v732 = vsel %vm568, %v705, 0
    %734 = vmatprep.subr.mxu0 0.0
    %735 = vmatpush1.msra.mxu0 0.0
    %736 = vmatprep.subr.mxu0 0.0
    %737 = vmatpush1.msra.mxu0 0.0
    %738 = vmatprep.subr.mxu0 0.0
    %739 = vmatpush1.msra.mxu0 0.0
    %740 = vmatprep.subr.mxu0 0.0
    %741 = vmatpush1.msra.mxu0 0.0
    %742 = vmatprep.subr.mxu0 0.0
    %743 = vmatpush1.msra.mxu0 0.0
    %744 = vmatprep.subr.mxu0 0.0
    %745 = vmatpush1.msra.mxu0 0.0
    %746 = vmatprep.subr.mxu0 0.0
    %747 = vmatpush1.msra.mxu0 0.0
    %748 = vmatprep.subr.mxu0 0.0
    %749 = vmatpush1.msra.mxu0 0.0
    %750 = vmatprep.subr.mxu0 0.0
    %751 = vmatpush1.msra.mxu0 0.0
    %752 = vmatprep.subr.mxu0 0.0
    %753 = vmatpush1.msra.mxu0 0.0
    %754 = vmatprep.subr.mxu0 0.0
    %755 = vmatpush1.msra.mxu0 0.0
    %756 = vmatprep.subr.mxu0 0.0
    %757 = vmatpush1.msra.mxu0 0.0
    %758 = vmatprep.subr.mxu0 0.0
    %759 = vmatpush1.msra.mxu0 0.0
    %760 = vmatprep.subr.mxu0 0.0
    %761 = vmatpush1.msra.mxu0 0.0
    %762 = vmatprep.subr.mxu0 0.0
    %763 = vmatpush1.msra.mxu0 0.0
    %764 = vmatprep.subr.mxu0 0.0
    %765 = vmatpush1.msra.mxu0 %v708
    %766 = vmatprep.subr.mxu0 0.0
    %767 = vmatpush2.msra.mxu0 0.0
    %768 = vmatprep.subr.mxu0 0.0
    %769 = vmatpush2.msra.mxu0 0.0
    %770 = vmatprep.subr.mxu0 0.0
    %771 = vmatpush2.msra.mxu0 0.0
    %772 = vmatprep.subr.mxu0 0.0
    %773 = vmatpush2.msra.mxu0 0.0
    %774 = vmatprep.subr.mxu0 0.0
    %775 = vmatpush2.msra.mxu0 0.0
    %776 = vmatprep.subr.mxu0 0.0
    %777 = vmatpush2.msra.mxu0 0.0
    %778 = vmatprep.subr.mxu0 0.0
    %779 = vmatpush2.msra.mxu0 0.0
    %780 = vmatprep.subr.mxu0 0.0
    %781 = vmatpush2.msra.mxu0 0.0
    %782 = vmatprep.subr.mxu0 0.0
    %783 = vmatpush2.msra.mxu0 0.0
    %784 = vmatprep.subr.mxu0 0.0
    %785 = vmatpush2.msra.mxu0 0.0
    %786 = vmatprep.subr.mxu0 0.0
    %787 = vmatpush2.msra.mxu0 0.0
    %788 = vmatprep.subr.mxu0 0.0
    %789 = vmatpush2.msra.mxu0 0.0
    %790 = vmatprep.subr.mxu0 0.0
    %791 = vmatpush2.msra.mxu0 0.0
    %792 = vmatprep.subr.mxu0 0.0
    %793 = vmatpush2.msra.mxu0 0.0
    %794 = vmatprep.subr.mxu0 0.0
    %795 = vmatpush2.msra.mxu0 0.0
    %796 = vmatprep.subr.mxu0 0.0
    %797 = vmatpush2.msra.mxu0 0.0
    %798 = vmatprep.mubr.f32.mxu0 0.0
    %799 = vmatmul.mubr.f32.gmra.mxu0 %v711
    %v800 = vpop.f32.mrf.mxu0
    %v801 = vadd.f32 0.0, %v800
    %v802 = vpop.f32.mrf.mxu0
    %803 = vmatprep.mubr.f32.mxu0 0.0
    %804 = vmatmul.mubr.f32.gmra.mxu0 %v714
    %v805 = vpop.f32.mrf.mxu0
    %v806 = vadd.f32 0.0, %v805
    %v807 = vpop.f32.mrf.mxu0
    %808 = vmatprep.mubr.f32.mxu0 0.0
    %809 = vmatmul.mubr.f32.gmra.mxu0 %v717
    %v810 = vpop.f32.mrf.mxu0
    %v811 = vadd.f32 0.0, %v810
    %v812 = vpop.f32.mrf.mxu0
    %813 = vmatprep.mubr.f32.mxu0 0.0
    %814 = vmatmul.mubr.f32.gmra.mxu0 %v720
    %v815 = vpop.f32.mrf.mxu0
    %v816 = vadd.f32 0.0, %v815
    %v817 = vpop.f32.mrf.mxu0
    %818 = vmatprep.mubr.f32.mxu0 0.0
    %819 = vmatmul.mubr.f32.gmra.mxu0 %v723
    %v820 = vpop.f32.mrf.mxu0
    %v821 = vadd.f32 0.0, %v820
    %v822 = vpop.f32.mrf.mxu0
    %823 = vmatprep.mubr.f32.mxu0 0.0
    %824 = vmatmul.mubr.f32.gmra.mxu0 %v726
    %v825 = vpop.f32.mrf.mxu0
    %v826 = vadd.f32 0.0, %v825
    %v827 = vpop.f32.mrf.mxu0
    %828 = vmatprep.mubr.f32.mxu0 0.0
    %829 = vmatmul.mubr.f32.gmra.mxu0 %v729
    %v830 = vpop.f32.mrf.mxu0
    %v831 = vadd.f32 0.0, %v830
    %v832 = vpop.f32.mrf.mxu0
    %833 = vmatprep.mubr.f32.mxu0 0.0
    %834 = vmatmul.mubr.f32.gmra.mxu0 %v732
    %v835 = vpop.f32.mrf.mxu0
    %v836 = vadd.f32 0.0, %v835
    %v837 = vpop.f32.mrf.mxu0
    %838 = vdwg.mxu0
    %839 = vrot.lane.b32.xlu0 %v424, 64
    %v840 = vpop.permute.xlu0 %839
    %842 = vmatprep.subr.mxu0 0.0
    %843 = vmatpush1.msra.mxu0 0.0
    %844 = vmatprep.subr.mxu0 0.0
    %845 = vmatpush1.msra.mxu0 0.0
    %846 = vmatprep.subr.mxu0 0.0
    %847 = vmatpush1.msra.mxu0 0.0
    %848 = vmatprep.subr.mxu0 0.0
    %849 = vmatpush1.msra.mxu0 0.0
    %850 = vmatprep.subr.mxu0 0.0
    %851 = vmatpush1.msra.mxu0 0.0
    %852 = vmatprep.subr.mxu0 0.0
    %853 = vmatpush1.msra.mxu0 0.0
    %854 = vmatprep.subr.mxu0 0.0
    %855 = vmatpush1.msra.mxu0 0.0
    %856 = vmatprep.subr.mxu0 0.0
    %857 = vmatpush1.msra.mxu0 0.0
    %858 = vmatprep.subr.mxu0 0.0
    %859 = vmatpush1.msra.mxu0 0.0
    %860 = vmatprep.subr.mxu0 0.0
    %861 = vmatpush1.msra.mxu0 0.0
    %862 = vmatprep.subr.mxu0 0.0
    %863 = vmatpush1.msra.mxu0 0.0
    %864 = vmatprep.subr.mxu0 0.0
    %865 = vmatpush1.msra.mxu0 0.0
    %866 = vmatprep.subr.mxu0 0.0
    %867 = vmatpush1.msra.mxu0 0.0
    %868 = vmatprep.subr.mxu0 0.0
    %869 = vmatpush1.msra.mxu0 0.0
    %870 = vmatprep.subr.mxu0 0.0
    %871 = vmatpush1.msra.mxu0 0.0
    %872 = vmatprep.subr.mxu0 0.0
    %873 = vmatpush1.msra.mxu0 %v840
    %874 = vmatprep.subr.mxu0 0.0
    %875 = vmatpush2.msra.mxu0 0.0
    %876 = vmatprep.subr.mxu0 0.0
    %877 = vmatpush2.msra.mxu0 0.0
    %878 = vmatprep.subr.mxu0 0.0
    %879 = vmatpush2.msra.mxu0 0.0
    %880 = vmatprep.subr.mxu0 0.0
    %881 = vmatpush2.msra.mxu0 0.0
    %882 = vmatprep.subr.mxu0 0.0
    %883 = vmatpush2.msra.mxu0 0.0
    %884 = vmatprep.subr.mxu0 0.0
    %885 = vmatpush2.msra.mxu0 0.0
    %886 = vmatprep.subr.mxu0 0.0
    %887 = vmatpush2.msra.mxu0 0.0
    %888 = vmatprep.subr.mxu0 0.0
    %889 = vmatpush2.msra.mxu0 0.0
    %890 = vmatprep.subr.mxu0 0.0
    %891 = vmatpush2.msra.mxu0 0.0
    %892 = vmatprep.subr.mxu0 0.0
    %893 = vmatpush2.msra.mxu0 0.0
    %894 = vmatprep.subr.mxu0 0.0
    %895 = vmatpush2.msra.mxu0 0.0
    %896 = vmatprep.subr.mxu0 0.0
    %897 = vmatpush2.msra.mxu0 0.0
    %898 = vmatprep.subr.mxu0 0.0
    %899 = vmatpush2.msra.mxu0 0.0
    %900 = vmatprep.subr.mxu0 0.0
    %901 = vmatpush2.msra.mxu0 0.0
    %902 = vmatprep.subr.mxu0 0.0
    %903 = vmatpush2.msra.mxu0 0.0
    %904 = vmatprep.subr.mxu0 0.0
    %905 = vmatpush2.msra.mxu0 0.0
    %906 = vmatprep.mubr.f32.mxu0 0.0
    %907 = vmatmul.mubr.f32.gmra.mxu0 %v711
    %v908 = vpop.f32.mrf.mxu0
    %v909 = vadd.f32 0.0, %v908
    %v910 = vpop.f32.mrf.mxu0
    %911 = vmatprep.mubr.f32.mxu0 0.0
    %912 = vmatmul.mubr.f32.gmra.mxu0 %v714
    %v913 = vpop.f32.mrf.mxu0
    %v914 = vadd.f32 0.0, %v913
    %v915 = vpop.f32.mrf.mxu0
    %916 = vmatprep.mubr.f32.mxu0 0.0
    %917 = vmatmul.mubr.f32.gmra.mxu0 %v717
    %v918 = vpop.f32.mrf.mxu0
    %v919 = vadd.f32 0.0, %v918
    %v920 = vpop.f32.mrf.mxu0
    %921 = vmatprep.mubr.f32.mxu0 0.0
    %922 = vmatmul.mubr.f32.gmra.mxu0 %v720
    %v923 = vpop.f32.mrf.mxu0
    %v924 = vadd.f32 0.0, %v923
    %v925 = vpop.f32.mrf.mxu0
    %926 = vmatprep.mubr.f32.mxu0 0.0
    %927 = vmatmul.mubr.f32.gmra.mxu0 %v723
    %v928 = vpop.f32.mrf.mxu0
    %v929 = vadd.f32 0.0, %v928
    %v930 = vpop.f32.mrf.mxu0
    %931 = vmatprep.mubr.f32.mxu0 0.0
    %932 = vmatmul.mubr.f32.gmra.mxu0 %v726
    %v933 = vpop.f32.mrf.mxu0
    %v934 = vadd.f32 0.0, %v933
    %v935 = vpop.f32.mrf.mxu0
    %936 = vmatprep.mubr.f32.mxu0 0.0
    %937 = vmatmul.mubr.f32.gmra.mxu0 %v729
    %v938 = vpop.f32.mrf.mxu0
    %v939 = vadd.f32 0.0, %v938
    %v940 = vpop.f32.mrf.mxu0
    %941 = vmatprep.mubr.f32.mxu0 0.0
    %942 = vmatmul.mubr.f32.gmra.mxu0 %v732
    %v943 = vpop.f32.mrf.mxu0
    %v944 = vadd.f32 0.0, %v943
    %v945 = vpop.f32.mrf.mxu0
    %946 = vdwg.mxu0
    %v947 = vmul.f32 %v660, %v801
    %v948 = vmul.f32 %v665, %v806
    %v949 = vmul.f32 %v670, %v811
    %v950 = vmul.f32 %v675, %v816
    %v951 = vmul.f32 %v680, %v821
    %v952 = vmul.f32 %v685, %v826
    %v953 = vmul.f32 %v690, %v831
    %v954 = vmul.f32 %v695, %v836
    %v955 = vmul.f32 %v947, 0.35355338
    %v956 = vmul.f32 %v948, 0.35355338
    %v957 = vmul.f32 %v949, 0.35355338
    %v958 = vmul.f32 %v950, 0.35355338
    %v959 = vmul.f32 %v951, 0.35355338
    %v960 = vmul.f32 %v952, 0.35355338
    %v961 = vmul.f32 %v953, 0.35355338
    %v962 = vmul.f32 %v954, 0.35355338
    %v963 = vmul.f32 %v955, %v522
    %v964 = vmul.f32 %v956, %v527
    %v965 = vmul.f32 %v957, %v532
    %v966 = vmul.f32 %v958, %v537
    %v967 = vmul.f32 %v959, %v542
    %v968 = vmul.f32 %v960, %v547
    %v969 = vmul.f32 %v961, %v552
    %v970 = vmul.f32 %v962, %v557
    %v971 = vld [vmem:[#allocation2] sm:$0xff]
    %v972 = vld [vmem:[#allocation2 + $0x8] sm:$0xff]
    %v973 = vld [vmem:[#allocation2 + $0x10] sm:$0xff]
    %v974 = vld [vmem:[#allocation2 + $0x18] sm:$0xff]
    %v976 = vsel %vm353, %v963, 0
    %v979 = vsel %vm353, %v964, 0
    %v982 = vsel %vm353, %v965, 0
    %v985 = vsel %vm353, %v966, 0
    %v988 = vsel %vm353, %v967, 0
    %v991 = vsel %vm353, %v968, 0
    %v994 = vsel %vm353, %v969, 0
    %v997 = vsel %vm353, %v970, 0
    %999 = vmatprep.subr.mxu0 0.0
    %1000 = vmatpush1.msra.mxu0 0.0
    %1001 = vmatprep.subr.mxu0 0.0
    %1002 = vmatpush1.msra.mxu0 0.0
    %1003 = vmatprep.subr.mxu0 0.0
    %1004 = vmatpush1.msra.mxu0 0.0
    %1005 = vmatprep.subr.mxu0 0.0
    %1006 = vmatpush1.msra.mxu0 0.0
    %1007 = vmatprep.subr.mxu0 0.0
    %1008 = vmatpush1.msra.mxu0 0.0
    %1009 = vmatprep.subr.mxu0 0.0
    %1010 = vmatpush1.msra.mxu0 0.0
    %1011 = vmatprep.subr.mxu0 0.0
    %1012 = vmatpush1.msra.mxu0 0.0
    %1013 = vmatprep.subr.mxu0 0.0
    %1014 = vmatpush1.msra.mxu0 0.0
    %1015 = vmatprep.subr.mxu0 0.0
    %1016 = vmatpush1.msra.mxu0 0.0
    %1017 = vmatprep.subr.mxu0 0.0
    %1018 = vmatpush1.msra.mxu0 0.0
    %1019 = vmatprep.subr.mxu0 0.0
    %1020 = vmatpush1.msra.mxu0 0.0
    %1021 = vmatprep.subr.mxu0 0.0
    %1022 = vmatpush1.msra.mxu0 0.0
    %1023 = vmatprep.subr.mxu0 0.0
    %1024 = vmatpush1.msra.mxu0 %v974
    %1025 = vmatprep.subr.mxu0 0.0
    %1026 = vmatpush1.msra.mxu0 %v973
    %1027 = vmatprep.subr.mxu0 0.0
    %1028 = vmatpush1.msra.mxu0 %v972
    %1029 = vmatprep.subr.mxu0 0.0
    %1030 = vmatpush1.msra.mxu0 %v971
    %1031 = vmatprep.subr.mxu0 0.0
    %1032 = vmatpush2.msra.mxu0 0.0
    %1033 = vmatprep.subr.mxu0 0.0
    %1034 = vmatpush2.msra.mxu0 0.0
    %1035 = vmatprep.subr.mxu0 0.0
    %1036 = vmatpush2.msra.mxu0 0.0
    %1037 = vmatprep.subr.mxu0 0.0
    %1038 = vmatpush2.msra.mxu0 0.0
    %1039 = vmatprep.subr.mxu0 0.0
    %1040 = vmatpush2.msra.mxu0 0.0
    %1041 = vmatprep.subr.mxu0 0.0
    %1042 = vmatpush2.msra.mxu0 0.0
    %1043 = vmatprep.subr.mxu0 0.0
    %1044 = vmatpush2.msra.mxu0 0.0
    %1045 = vmatprep.subr.mxu0 0.0
    %1046 = vmatpush2.msra.mxu0 0.0
    %1047 = vmatprep.subr.mxu0 0.0
    %1048 = vmatpush2.msra.mxu0 0.0
    %1049 = vmatprep.subr.mxu0 0.0
    %1050 = vmatpush2.msra.mxu0 0.0
    %1051 = vmatprep.subr.mxu0 0.0
    %1052 = vmatpush2.msra.mxu0 0.0
    %1053 = vmatprep.subr.mxu0 0.0
    %1054 = vmatpush2.msra.mxu0 0.0
    %1055 = vmatprep.subr.mxu0 0.0
    %1056 = vmatpush2.msra.mxu0 0.0
    %1057 = vmatprep.subr.mxu0 0.0
    %1058 = vmatpush2.msra.mxu0 0.0
    %1059 = vmatprep.subr.mxu0 0.0
    %1060 = vmatpush2.msra.mxu0 0.0
    %1061 = vmatprep.subr.mxu0 0.0
    %1062 = vmatpush2.msra.mxu0 0.0
    %1063 = vmatprep.mubr.f32.mxu0 0.0
    %1064 = vmatmul.mubr.f32.gmra.mxu0 %v976
    %v1065 = vpop.f32.mrf.mxu0
    %v1066 = vadd.f32 0.0, %v1065
    %v1067 = vpop.f32.mrf.mxu0
    %1068 = vmatprep.mubr.f32.mxu0 0.0
    %1069 = vmatmul.mubr.f32.gmra.mxu0 %v979
    %v1070 = vpop.f32.mrf.mxu0
    %v1071 = vadd.f32 0.0, %v1070
    %v1072 = vpop.f32.mrf.mxu0
    %1073 = vmatprep.mubr.f32.mxu0 0.0
    %1074 = vmatmul.mubr.f32.gmra.mxu0 %v982
    %v1075 = vpop.f32.mrf.mxu0
    %v1076 = vadd.f32 0.0, %v1075
    %v1077 = vpop.f32.mrf.mxu0
    %1078 = vmatprep.mubr.f32.mxu0 0.0
    %1079 = vmatmul.mubr.f32.gmra.mxu0 %v985
    %v1080 = vpop.f32.mrf.mxu0
    %v1081 = vadd.f32 0.0, %v1080
    %v1082 = vpop.f32.mrf.mxu0
    %1083 = vmatprep.mubr.f32.mxu0 0.0
    %1084 = vmatmul.mubr.f32.gmra.mxu0 %v988
    %v1085 = vpop.f32.mrf.mxu0
    %v1086 = vadd.f32 0.0, %v1085
    %v1087 = vpop.f32.mrf.mxu0
    %1088 = vmatprep.mubr.f32.mxu0 0.0
    %1089 = vmatmul.mubr.f32.gmra.mxu0 %v991
    %v1090 = vpop.f32.mrf.mxu0
    %v1091 = vadd.f32 0.0, %v1090
    %v1092 = vpop.f32.mrf.mxu0
    %1093 = vmatprep.mubr.f32.mxu0 0.0
    %1094 = vmatmul.mubr.f32.gmra.mxu0 %v994
    %v1095 = vpop.f32.mrf.mxu0
    %v1096 = vadd.f32 0.0, %v1095
    %v1097 = vpop.f32.mrf.mxu0
    %1098 = vmatprep.mubr.f32.mxu0 0.0
    %1099 = vmatmul.mubr.f32.gmra.mxu0 %v997
    %v1100 = vpop.f32.mrf.mxu0
    %v1101 = vadd.f32 0.0, %v1100
    %v1102 = vpop.f32.mrf.mxu0
    %1103 = vdwg.mxu0
    %v1104 = vmax.f32 %v1066, -5.0
    %v1105 = vmax.f32 %v1071, -5.0
    %v1106 = vmax.f32 %v1076, -5.0
    %v1107 = vmax.f32 %v1081, -5.0
    %v1108 = vmax.f32 %v1086, -5.0
    %v1109 = vmax.f32 %v1091, -5.0
    %v1110 = vmax.f32 %v1096, -5.0
    %v1111 = vmax.f32 %v1101, -5.0
    %v1112 = vmin.f32 %v1104, 5.0
    %v1113 = vmin.f32 %v1105, 5.0
    %v1114 = vmin.f32 %v1106, 5.0
    %v1115 = vmin.f32 %v1107, 5.0
    %v1116 = vmin.f32 %v1108, 5.0
    %v1117 = vmin.f32 %v1109, 5.0
    %v1118 = vmin.f32 %v1110, 5.0
    %v1119 = vmin.f32 %v1111, 5.0
    %v1120 = vmul.f32 %v1112, 1.442695
    %v1121 = vpow.pop %v1120
    %v1122 = vmul.f32 %v1113, 1.442695
    %v1123 = vpow.pop %v1122
    %v1124 = vmul.f32 %v1114, 1.442695
    %v1125 = vpow.pop %v1124
    %v1126 = vmul.f32 %v1115, 1.442695
    %v1127 = vpow.pop %v1126
    %v1128 = vmul.f32 %v1116, 1.442695
    %v1129 = vpow.pop %v1128
    %v1130 = vmul.f32 %v1117, 1.442695
    %v1131 = vpow.pop %v1130
    %v1132 = vmul.f32 %v1118, 1.442695
    %v1133 = vpow.pop %v1132
    %v1134 = vmul.f32 %v1119, 1.442695
    %v1135 = vpow.pop %v1134
    %v1136 = vld [vmem:[#allocation5] sm:$0xf]
    %vm1137 = vcmask 31744
    %v1139 = vsel %vm1137, %v1121, 0
    %v1142 = vsel %vm1137, %v1123, 0
    %v1145 = vsel %vm1137, %v1125, 0
    %v1148 = vsel %vm1137, %v1127, 0
    %v1151 = vsel %vm1137, %v1129, 0
    %v1154 = vsel %vm1137, %v1131, 0
    %v1157 = vsel %vm1137, %v1133, 0
    %v1160 = vsel %vm1137, %v1135, 0
    %vm1162 = vcmask 1043456
    %v1164 = vsel %vm1162, %v1136, 0
    %1166 = vmatprep.subr.mxu0 0.0
    %1167 = vmatpush1.msra.mxu0 0.0
    %1168 = vmatprep.subr.mxu0 0.0
    %1169 = vmatpush1.msra.mxu0 0.0
    %1170 = vmatprep.subr.mxu0 0.0
    %1171 = vmatpush1.msra.mxu0 0.0
    %1172 = vmatprep.subr.mxu0 0.0
    %1173 = vmatpush1.msra.mxu0 0.0
    %1174 = vmatprep.subr.mxu0 0.0
    %1175 = vmatpush1.msra.mxu0 0.0
    %1176 = vmatprep.subr.mxu0 0.0
    %1177 = vmatpush1.msra.mxu0 0.0
    %1178 = vmatprep.subr.mxu0 0.0
    %1179 = vmatpush1.msra.mxu0 0.0
    %1180 = vmatprep.subr.mxu0 0.0
    %1181 = vmatpush1.msra.mxu0 0.0
    %1182 = vmatprep.subr.mxu0 0.0
    %1183 = vmatpush1.msra.mxu0 0.0
    %1184 = vmatprep.subr.mxu0 0.0
    %1185 = vmatpush1.msra.mxu0 0.0
    %1186 = vmatprep.subr.mxu0 0.0
    %1187 = vmatpush1.msra.mxu0 0.0
    %1188 = vmatprep.subr.mxu0 0.0
    %1189 = vmatpush1.msra.mxu0 0.0
    %1190 = vmatprep.subr.mxu0 0.0
    %1191 = vmatpush1.msra.mxu0 0.0
    %1192 = vmatprep.subr.mxu0 0.0
    %1193 = vmatpush1.msra.mxu0 0.0
    %1194 = vmatprep.subr.mxu0 0.0
    %1195 = vmatpush1.msra.mxu0 0.0
    %1196 = vmatprep.subr.mxu0 0.0
    %1197 = vmatpush1.msra.mxu0 %v1164
    %1198 = vmatprep.subr.mxu0 0.0
    %1199 = vmatpush2.msra.mxu0 0.0
    %1200 = vmatprep.subr.mxu0 0.0
    %1201 = vmatpush2.msra.mxu0 0.0
    %1202 = vmatprep.subr.mxu0 0.0
    %1203 = vmatpush2.msra.mxu0 0.0
    %1204 = vmatprep.subr.mxu0 0.0
    %1205 = vmatpush2.msra.mxu0 0.0
    %1206 = vmatprep.subr.mxu0 0.0
    %1207 = vmatpush2.msra.mxu0 0.0
    %1208 = vmatprep.subr.mxu0 0.0
    %1209 = vmatpush2.msra.mxu0 0.0
    %1210 = vmatprep.subr.mxu0 0.0
    %1211 = vmatpush2.msra.mxu0 0.0
    %1212 = vmatprep.subr.mxu0 0.0
    %1213 = vmatpush2.msra.mxu0 0.0
    %1214 = vmatprep.subr.mxu0 0.0
    %1215 = vmatpush2.msra.mxu0 0.0
    %1216 = vmatprep.subr.mxu0 0.0
    %1217 = vmatpush2.msra.mxu0 0.0
    %1218 = vmatprep.subr.mxu0 0.0
    %1219 = vmatpush2.msra.mxu0 0.0
    %1220 = vmatprep.subr.mxu0 0.0
    %1221 = vmatpush2.msra.mxu0 0.0
    %1222 = vmatprep.subr.mxu0 0.0
    %1223 = vmatpush2.msra.mxu0 0.0
    %1224 = vmatprep.subr.mxu0 0.0
    %1225 = vmatpush2.msra.mxu0 0.0
    %1226 = vmatprep.subr.mxu0 0.0
    %1227 = vmatpush2.msra.mxu0 0.0
    %1228 = vmatprep.subr.mxu0 0.0
    %1229 = vmatpush2.msra.mxu0 0.0
    %1230 = vmatprep.mubr.f32.mxu0 0.0
    %1231 = vmatmul.mubr.f32.gmra.mxu0 %v1139
    %v1232 = vpop.f32.mrf.mxu0
    %v1233 = vadd.f32 0.0, %v1232
    %v1234 = vpop.f32.mrf.mxu0
    %1235 = vmatprep.mubr.f32.mxu0 0.0
    %1236 = vmatmul.mubr.f32.gmra.mxu0 %v1142
    %v1237 = vpop.f32.mrf.mxu0
    %v1238 = vadd.f32 0.0, %v1237
    %v1239 = vpop.f32.mrf.mxu0
    %1240 = vmatprep.mubr.f32.mxu0 0.0
    %1241 = vmatmul.mubr.f32.gmra.mxu0 %v1145
    %v1242 = vpop.f32.mrf.mxu0
    %v1243 = vadd.f32 0.0, %v1242
    %v1244 = vpop.f32.mrf.mxu0
    %1245 = vmatprep.mubr.f32.mxu0 0.0
    %1246 = vmatmul.mubr.f32.gmra.mxu0 %v1148
    %v1247 = vpop.f32.mrf.mxu0
    %v1248 = vadd.f32 0.0, %v1247
    %v1249 = vpop.f32.mrf.mxu0
    %1250 = vmatprep.mubr.f32.mxu0 0.0
    %1251 = vmatmul.mubr.f32.gmra.mxu0 %v1151
    %v1252 = vpop.f32.mrf.mxu0
    %v1253 = vadd.f32 0.0, %v1252
    %v1254 = vpop.f32.mrf.mxu0
    %1255 = vmatprep.mubr.f32.mxu0 0.0
    %1256 = vmatmul.mubr.f32.gmra.mxu0 %v1154
    %v1257 = vpop.f32.mrf.mxu0
    %v1258 = vadd.f32 0.0, %v1257
    %v1259 = vpop.f32.mrf.mxu0
    %1260 = vmatprep.mubr.f32.mxu0 0.0
    %1261 = vmatmul.mubr.f32.gmra.mxu0 %v1157
    %v1262 = vpop.f32.mrf.mxu0
    %v1263 = vadd.f32 0.0, %v1262
    %v1264 = vpop.f32.mrf.mxu0
    %1265 = vmatprep.mubr.f32.mxu0 0.0
    %1266 = vmatmul.mubr.f32.gmra.mxu0 %v1160
    %v1267 = vpop.f32.mrf.mxu0
    %v1268 = vadd.f32 0.0, %v1267
    %v1269 = vpop.f32.mrf.mxu0
    %1270 = vdwg.mxu0
    %v1271 = vld [vmem:[%s17] sm:$0xff]
    %v1272 = vmul.f32 %v1233, %v909
    %v1273 = vmul.f32 %v1238, %v914
    %v1274 = vmul.f32 %v1243, %v919
    %v1275 = vmul.f32 %v1248, %v924
    %v1276 = vmul.f32 %v1253, %v929
    %v1277 = vmul.f32 %v1258, %v934
    %v1278 = vmul.f32 %v1263, %v939
    %v1279 = vmul.f32 %v1268, %v944
    %vm1280 = vcmask 523264
    %v1282 = vsel %vm1280, %v1271, 0
    %1284 = vmatprep.subr.mxu0 0.0
    %1285 = vmatpush1.msra.mxu0 0.0
    %1286 = vmatprep.subr.mxu0 0.0
    %1287 = vmatpush1.msra.mxu0 0.0
    %1288 = vmatprep.subr.mxu0 0.0
    %1289 = vmatpush1.msra.mxu0 0.0
    %1290 = vmatprep.subr.mxu0 0.0
    %1291 = vmatpush1.msra.mxu0 0.0
    %1292 = vmatprep.subr.mxu0 0.0
    %1293 = vmatpush1.msra.mxu0 0.0
    %1294 = vmatprep.subr.mxu0 0.0
    %1295 = vmatpush1.msra.mxu0 0.0
    %1296 = vmatprep.subr.mxu0 0.0
    %1297 = vmatpush1.msra.mxu0 0.0
    %1298 = vmatprep.subr.mxu0 0.0
    %1299 = vmatpush1.msra.mxu0 0.0
    %1300 = vmatprep.subr.mxu0 0.0
    %1301 = vmatpush1.msra.mxu0 %v1279
    %1302 = vmatprep.subr.mxu0 0.0
    %1303 = vmatpush1.msra.mxu0 %v1278
    %1304 = vmatprep.subr.mxu0 0.0
    %1305 = vmatpush1.msra.mxu0 %v1277
    %1306 = vmatprep.subr.mxu0 0.0
    %1307 = vmatpush1.msra.mxu0 %v1276
    %1308 = vmatprep.subr.mxu0 0.0
    %1309 = vmatpush1.msra.mxu0 %v1275
    %1310 = vmatprep.subr.mxu0 0.0
    %1311 = vmatpush1.msra.mxu0 %v1274
    %1312 = vmatprep.subr.mxu0 0.0
    %1313 = vmatpush1.msra.mxu0 %v1273
    %1314 = vmatprep.subr.mxu0 0.0
    %1315 = vmatpush1.msra.mxu0 %v1272
    %1316 = vmatprep.subr.mxu0 0.0
    %1317 = vmatpush2.msra.mxu0 0.0
    %1318 = vmatprep.subr.mxu0 0.0
    %1319 = vmatpush2.msra.mxu0 0.0
    %1320 = vmatprep.subr.mxu0 0.0
    %1321 = vmatpush2.msra.mxu0 0.0
    %1322 = vmatprep.subr.mxu0 0.0
    %1323 = vmatpush2.msra.mxu0 0.0
    %1324 = vmatprep.subr.mxu0 0.0
    %1325 = vmatpush2.msra.mxu0 0.0
    %1326 = vmatprep.subr.mxu0 0.0
    %1327 = vmatpush2.msra.mxu0 0.0
    %1328 = vmatprep.subr.mxu0 0.0
    %1329 = vmatpush2.msra.mxu0 0.0
    %1330 = vmatprep.subr.mxu0 0.0
    %1331 = vmatpush2.msra.mxu0 0.0
    %1332 = vmatprep.subr.mxu0 0.0
    %1333 = vmatpush2.msra.mxu0 0.0
    %1334 = vmatprep.subr.mxu0 0.0
    %1335 = vmatpush2.msra.mxu0 0.0
    %1336 = vmatprep.subr.mxu0 0.0
    %1337 = vmatpush2.msra.mxu0 0.0
    %1338 = vmatprep.subr.mxu0 0.0
    %1339 = vmatpush2.msra.mxu0 0.0
    %1340 = vmatprep.subr.mxu0 0.0
    %1341 = vmatpush2.msra.mxu0 0.0
    %1342 = vmatprep.subr.mxu0 0.0
    %1343 = vmatpush2.msra.mxu0 0.0
    %1344 = vmatprep.subr.mxu0 0.0
    %1345 = vmatpush2.msra.mxu0 0.0
    %1346 = vmatprep.subr.mxu0 0.0
    %1347 = vmatpush2.msra.mxu0 0.0
    %1348 = vmatprep.mubr.f32.mxu0 0.0
    %1349 = vmatmul.mubr.f32.gmra.mxu0 %v1282
    %v1350 = vpop.f32.mrf.mxu0
    %v1351 = vadd.f32 0.0, %v1350
    %v1352 = vpop.f32.mrf.mxu0
    %1353 = vdwg.mxu0
    %1354 = vmatprep.subr.mxu0 0.0
    %1355 = vmatpush1.msra.mxu0 0.0
    %1356 = vmatprep.subr.mxu0 0.0
    %1357 = vmatpush1.msra.mxu0 0.0
    %1358 = vmatprep.subr.mxu0 0.0
    %1359 = vmatpush1.msra.mxu0 0.0
    %1360 = vmatprep.subr.mxu0 0.0
    %1361 = vmatpush1.msra.mxu0 0.0
    %1362 = vmatprep.subr.mxu0 0.0
    %1363 = vmatpush1.msra.mxu0 0.0
    %1364 = vmatprep.subr.mxu0 0.0
    %1365 = vmatpush1.msra.mxu0 0.0
    %1366 = vmatprep.subr.mxu0 0.0
    %1367 = vmatpush1.msra.mxu0 0.0
    %1368 = vmatprep.subr.mxu0 0.0
    %1369 = vmatpush1.msra.mxu0 0.0
    %1370 = vmatprep.subr.mxu0 0.0
    %1371 = vmatpush1.msra.mxu0 %v1268
    %1372 = vmatprep.subr.mxu0 0.0
    %1373 = vmatpush1.msra.mxu0 %v1263
    %1374 = vmatprep.subr.mxu0 0.0
    %1375 = vmatpush1.msra.mxu0 %v1258
    %1376 = vmatprep.subr.mxu0 0.0
    %1377 = vmatpush1.msra.mxu0 %v1253
    %1378 = vmatprep.subr.mxu0 0.0
    %1379 = vmatpush1.msra.mxu0 %v1248
    %1380 = vmatprep.subr.mxu0 0.0
    %1381 = vmatpush1.msra.mxu0 %v1243
    %1382 = vmatprep.subr.mxu0 0.0
    %1383 = vmatpush1.msra.mxu0 %v1238
    %1384 = vmatprep.subr.mxu0 0.0
    %1385 = vmatpush1.msra.mxu0 %v1233
    %1386 = vmatprep.subr.mxu0 0.0
    %1387 = vmatpush2.msra.mxu0 0.0
    %1388 = vmatprep.subr.mxu0 0.0
    %1389 = vmatpush2.msra.mxu0 0.0
    %1390 = vmatprep.subr.mxu0 0.0
    %1391 = vmatpush2.msra.mxu0 0.0
    %1392 = vmatprep.subr.mxu0 0.0
    %1393 = vmatpush2.msra.mxu0 0.0
    %1394 = vmatprep.subr.mxu0 0.0
    %1395 = vmatpush2.msra.mxu0 0.0
    %1396 = vmatprep.subr.mxu0 0.0
    %1397 = vmatpush2.msra.mxu0 0.0
    %1398 = vmatprep.subr.mxu0 0.0
    %1399 = vmatpush2.msra.mxu0 0.0
    %1400 = vmatprep.subr.mxu0 0.0
    %1401 = vmatpush2.msra.mxu0 0.0
    %1402 = vmatprep.subr.mxu0 0.0
    %1403 = vmatpush2.msra.mxu0 0.0
    %1404 = vmatprep.subr.mxu0 0.0
    %1405 = vmatpush2.msra.mxu0 0.0
    %1406 = vmatprep.subr.mxu0 0.0
    %1407 = vmatpush2.msra.mxu0 0.0
    %1408 = vmatprep.subr.mxu0 0.0
    %1409 = vmatpush2.msra.mxu0 0.0
    %1410 = vmatprep.subr.mxu0 0.0
    %1411 = vmatpush2.msra.mxu0 0.0
    %1412 = vmatprep.subr.mxu0 0.0
    %1413 = vmatpush2.msra.mxu0 0.0
    %1414 = vmatprep.subr.mxu0 0.0
    %1415 = vmatpush2.msra.mxu0 0.0
    %1416 = vmatprep.subr.mxu0 0.0
    %1417 = vmatpush2.msra.mxu0 0.0
    %1418 = vmatprep.mubr.f32.mxu0 0.0
    %1419 = vmatmul.mubr.f32.gmra.mxu0 %v1282
    %v1420 = vpop.f32.mrf.mxu0
    %v1421 = vadd.f32 1e-06, %v1420
    %v1422 = vpop.f32.mrf.mxu0
    %1423 = vdwg.mxu0
    %v1424 = vrcp.pop %v1421
    %v1425 = vmul.f32 %v1351, %v1424
    %v1426 = vld [vmem:[%s19] sm:$0xff]
    %v1427 = vld [vmem:[%s19 + $0x8] sm:$0xff]
    %v1428 = vld [vmem:[%s19 + $0x10] sm:$0xff]
    %v1429 = vld [vmem:[%s19 + $0x18] sm:$0xff]
    %v1430 = vld [vmem:[#allocation7] sm:$0x1]
    %v1432 = vlaneseq
    %v1433 = vshrl.u32 %v1432, 7
    %v1434 = vsub.s32 0, %v1433
    %v1435 = vrot.slane %v1430, %v1434
    %v1438 = vsel %vm353, %v1425, 0
    %1440 = vmatprep.subr.mxu0 0.0
    %1441 = vmatpush1.msra.mxu0 0.0
    %1442 = vmatprep.subr.mxu0 0.0
    %1443 = vmatpush1.msra.mxu0 0.0
    %1444 = vmatprep.subr.mxu0 0.0
    %1445 = vmatpush1.msra.mxu0 0.0
    %1446 = vmatprep.subr.mxu0 0.0
    %1447 = vmatpush1.msra.mxu0 0.0
    %1448 = vmatprep.subr.mxu0 0.0
    %1449 = vmatpush1.msra.mxu0 0.0
    %1450 = vmatprep.subr.mxu0 0.0
    %1451 = vmatpush1.msra.mxu0 0.0
    %1452 = vmatprep.subr.mxu0 0.0
    %1453 = vmatpush1.msra.mxu0 0.0
    %1454 = vmatprep.subr.mxu0 0.0
    %1455 = vmatpush1.msra.mxu0 0.0
    %1456 = vmatprep.subr.mxu0 0.0
    %1457 = vmatpush1.msra.mxu0 0.0
    %1458 = vmatprep.subr.mxu0 0.0
    %1459 = vmatpush1.msra.mxu0 0.0
    %1460 = vmatprep.subr.mxu0 0.0
    %1461 = vmatpush1.msra.mxu0 0.0
    %1462 = vmatprep.subr.mxu0 0.0
    %1463 = vmatpush1.msra.mxu0 0.0
    %1464 = vmatprep.subr.mxu0 0.0
    %1465 = vmatpush1.msra.mxu0 %v1429
    %1466 = vmatprep.subr.mxu0 0.0
    %1467 = vmatpush1.msra.mxu0 %v1428
    %1468 = vmatprep.subr.mxu0 0.0
    %1469 = vmatpush1.msra.mxu0 %v1427
    %1470 = vmatprep.subr.mxu0 0.0
    %1471 = vmatpush1.msra.mxu0 %v1426
    %1472 = vmatprep.subr.mxu0 0.0
    %1473 = vmatpush2.msra.mxu0 0.0
    %1474 = vmatprep.subr.mxu0 0.0
    %1475 = vmatpush2.msra.mxu0 0.0
    %1476 = vmatprep.subr.mxu0 0.0
    %1477 = vmatpush2.msra.mxu0 0.0
    %1478 = vmatprep.subr.mxu0 0.0
    %1479 = vmatpush2.msra.mxu0 0.0
    %1480 = vmatprep.subr.mxu0 0.0
    %1481 = vmatpush2.msra.mxu0 0.0
    %1482 = vmatprep.subr.mxu0 0.0
    %1483 = vmatpush2.msra.mxu0 0.0
    %1484 = vmatprep.subr.mxu0 0.0
    %1485 = vmatpush2.msra.mxu0 0.0
    %1486 = vmatprep.subr.mxu0 0.0
    %1487 = vmatpush2.msra.mxu0 0.0
    %1488 = vmatprep.subr.mxu0 0.0
    %1489 = vmatpush2.msra.mxu0 0.0
    %1490 = vmatprep.subr.mxu0 0.0
    %1491 = vmatpush2.msra.mxu0 0.0
    %1492 = vmatprep.subr.mxu0 0.0
    %1493 = vmatpush2.msra.mxu0 0.0
    %1494 = vmatprep.subr.mxu0 0.0
    %1495 = vmatpush2.msra.mxu0 0.0
    %1496 = vmatprep.subr.mxu0 0.0
    %1497 = vmatpush2.msra.mxu0 0.0
    %1498 = vmatprep.subr.mxu0 0.0
    %1499 = vmatpush2.msra.mxu0 0.0
    %1500 = vmatprep.subr.mxu0 0.0
    %1501 = vmatpush2.msra.mxu0 0.0
    %1502 = vmatprep.subr.mxu0 0.0
    %1503 = vmatpush2.msra.mxu0 0.0
    %1504 = vmatprep.mubr.f32.mxu0 0.0
    %1505 = vmatmul.mubr.f32.gmra.mxu0 %v1438
    %v1506 = vpop.f32.mrf.mxu0
    %v1507 = vadd.f32 %v1435, %v1506
    %v1508 = vpop.f32.mrf.mxu0
    %1509 = vdwg.mxu0
    %v1510 = vadd.f32 %v340, %v1507
    %v1511 = vsel %vm353, %v1510, 0.0
    %v1512 = vrot.slane %v1511, 4
    %v1513 = vadd.f32 %v1511, %v1512
    %v1514 = vrot.slane %v1513, 2
    %v1515 = vadd.f32 %v1513, %v1514
    %v1516 = vrot.slane %v1515, 1
    %v1517 = vadd.f32 %v1515, %v1516
    %v1518 = vrcp.pop 8.0
    %v1519 = vmul.f32 %v1517, %v1518
    %v1520 = vsub.f32 %v1510, %v1519
    %v1521 = vmul.f32 %v1520, %v1520
    %v1522 = vsel %vm353, %v1521, 0.0
    %v1523 = vrot.slane %v1522, 4
    %v1524 = vadd.f32 %v1522, %v1523
    %v1525 = vrot.slane %v1524, 2
    %v1526 = vadd.f32 %v1524, %v1525
    %v1527 = vrot.slane %v1526, 1
    %v1528 = vadd.f32 %v1526, %v1527
    %v1529 = vmul.f32 %v1528, %v1518
    %v1530 = vadd.f32 %v1529, 1e-05
    %v1531 = vrsqrt.pop %v1530
    %v1532 = vmul.f32 %v1520, %v1531
    %v1533 = vld [vmem:[#allocation8] sm:$0x1]
    %v1535 = vlaneseq
    %v1536 = vshrl.u32 %v1535, 7
    %v1537 = vsub.s32 0, %v1536
    %v1538 = vrot.slane %v1533, %v1537
    %v1540 = vmul.f32 %v1532, %v1538
    %v1541 = vld [vmem:[#allocation10] sm:$0x1]
    %v1543 = vlaneseq
    %v1544 = vshrl.u32 %v1543, 7
    %v1545 = vsub.s32 0, %v1544
    %v1546 = vrot.slane %v1541, %v1545
    %v1548 = vadd.f32 %v1540, %v1546
    %v1549 = vld [vmem:[#allocation11] sm:$0xff]
    %v1550 = vld [vmem:[#allocation11 + $0x8] sm:$0xff]
    %v1551 = vld [vmem:[#allocation11 + $0x10] sm:$0xff]
    %v1552 = vld [vmem:[#allocation11 + $0x18] sm:$0xff]
    %v1553 = vld [vmem:[#allocation13] sm:$0x1]
    %v1555 = vlaneseq
    %v1556 = vshrl.u32 %v1555, 7
    %v1557 = vsub.s32 0, %v1556
    %v1558 = vrot.slane %v1553, %v1557
    %v1561 = vsel %vm353, %v1548, 0
    %1563 = vmatprep.subr.mxu0 0.0
    %1564 = vmatpush1.msra.mxu0 0.0
    %1565 = vmatprep.subr.mxu0 0.0
    %1566 = vmatpush1.msra.mxu0 0.0
    %1567 = vmatprep.subr.mxu0 0.0
    %1568 = vmatpush1.msra.mxu0 0.0
    %1569 = vmatprep.subr.mxu0 0.0
    %1570 = vmatpush1.msra.mxu0 0.0
    %1571 = vmatprep.subr.mxu0 0.0
    %1572 = vmatpush1.msra.mxu0 0.0
    %1573 = vmatprep.subr.mxu0 0.0
    %1574 = vmatpush1.msra.mxu0 0.0
    %1575 = vmatprep.subr.mxu0 0.0
    %1576 = vmatpush1.msra.mxu0 0.0
    %1577 = vmatprep.subr.mxu0 0.0
    %1578 = vmatpush1.msra.mxu0 0.0
    %1579 = vmatprep.subr.mxu0 0.0
    %1580 = vmatpush1.msra.mxu0 0.0
    %1581 = vmatprep.subr.mxu0 0.0
    %1582 = vmatpush1.msra.mxu0 0.0
    %1583 = vmatprep.subr.mxu0 0.0
    %1584 = vmatpush1.msra.mxu0 0.0
    %1585 = vmatprep.subr.mxu0 0.0
    %1586 = vmatpush1.msra.mxu0 0.0
    %1587 = vmatprep.subr.mxu0 0.0
    %1588 = vmatpush1.msra.mxu0 %v1552
    %1589 = vmatprep.subr.mxu0 0.0
    %1590 = vmatpush1.msra.mxu0 %v1551
    %1591 = vmatprep.subr.mxu0 0.0
    %1592 = vmatpush1.msra.mxu0 %v1550
    %1593 = vmatprep.subr.mxu0 0.0
    %1594 = vmatpush1.msra.mxu0 %v1549
    %1595 = vmatprep.subr.mxu0 0.0
    %1596 = vmatpush2.msra.mxu0 0.0
    %1597 = vmatprep.subr.mxu0 0.0
    %1598 = vmatpush2.msra.mxu0 0.0
    %1599 = vmatprep.subr.mxu0 0.0
    %1600 = vmatpush2.msra.mxu0 0.0
    %1601 = vmatprep.subr.mxu0 0.0
    %1602 = vmatpush2.msra.mxu0 0.0
    %1603 = vmatprep.subr.mxu0 0.0
    %1604 = vmatpush2.msra.mxu0 0.0
    %1605 = vmatprep.subr.mxu0 0.0
    %1606 = vmatpush2.msra.mxu0 0.0
    %1607 = vmatprep.subr.mxu0 0.0
    %1608 = vmatpush2.msra.mxu0 0.0
    %1609 = vmatprep.subr.mxu0 0.0
    %1610 = vmatpush2.msra.mxu0 0.0
    %1611 = vmatprep.subr.mxu0 0.0
    %1612 = vmatpush2.msra.mxu0 0.0
    %1613 = vmatprep.subr.mxu0 0.0
    %1614 = vmatpush2.msra.mxu0 0.0
    %1615 = vmatprep.subr.mxu0 0.0
    %1616 = vmatpush2.msra.mxu0 0.0
    %1617 = vmatprep.subr.mxu0 0.0
    %1618 = vmatpush2.msra.mxu0 0.0
    %1619 = vmatprep.subr.mxu0 0.0
    %1620 = vmatpush2.msra.mxu0 0.0
    %1621 = vmatprep.subr.mxu0 0.0
    %1622 = vmatpush2.msra.mxu0 0.0
    %1623 = vmatprep.subr.mxu0 0.0
    %1624 = vmatpush2.msra.mxu0 0.0
    %1625 = vmatprep.subr.mxu0 0.0
    %1626 = vmatpush2.msra.mxu0 0.0
    %1627 = vmatprep.mubr.f32.mxu0 0.0
    %1628 = vmatmul.mubr.f32.gmra.mxu0 %v1561
    %v1629 = vpop.f32.mrf.mxu0
    %v1630 = vadd.f32 %v1558, %v1629
    %v1631 = vpop.f32.mrf.mxu0
    %1632 = vdwg.mxu0
    %v1633 = vmax.f32 %v1630, 0.0
    %v1634 = vld [vmem:[%s31] sm:$0xff]
    %v1635 = vld [vmem:[%s31 + $0x8] sm:$0xff]
    %v1636 = vld [vmem:[%s31 + $0x10] sm:$0xff]
    %v1637 = vld [vmem:[%s31 + $0x18] sm:$0xff]
    %v1638 = vld [vmem:[%s31 + $0x20] sm:$0xff]
    %v1639 = vld [vmem:[%s31 + $0x28] sm:$0xff]
    %v1640 = vld [vmem:[%s31 + $0x30] sm:$0xff]
    %v1641 = vld [vmem:[%s31 + $0x38] sm:$0xff]
    %v1642 = vld [vmem:[#allocation14] sm:$0x1]
    %v1644 = vlaneseq
    %v1645 = vshrl.u32 %v1644, 7
    %v1646 = vsub.s32 0, %v1645
    %v1647 = vrot.slane %v1642, %v1646
    %v1650 = vsel %vm1280, %v1633, 0
    %1652 = vmatprep.subr.mxu0 0.0
    %1653 = vmatpush1.msra.mxu0 0.0
    %1654 = vmatprep.subr.mxu0 0.0
    %1655 = vmatpush1.msra.mxu0 0.0
    %1656 = vmatprep.subr.mxu0 0.0
    %1657 = vmatpush1.msra.mxu0 0.0
    %1658 = vmatprep.subr.mxu0 0.0
    %1659 = vmatpush1.msra.mxu0 0.0
    %1660 = vmatprep.subr.mxu0 0.0
    %1661 = vmatpush1.msra.mxu0 0.0
    %1662 = vmatprep.subr.mxu0 0.0
    %1663 = vmatpush1.msra.mxu0 0.0
    %1664 = vmatprep.subr.mxu0 0.0
    %1665 = vmatpush1.msra.mxu0 0.0
    %1666 = vmatprep.subr.mxu0 0.0
    %1667 = vmatpush1.msra.mxu0 0.0
    %1668 = vmatprep.subr.mxu0 0.0
    %1669 = vmatpush1.msra.mxu0 %v1641
    %1670 = vmatprep.subr.mxu0 0.0
    %1671 = vmatpush1.msra.mxu0 %v1640
    %1672 = vmatprep.subr.mxu0 0.0
    %1673 = vmatpush1.msra.mxu0 %v1639
    %1674 = vmatprep.subr.mxu0 0.0
    %1675 = vmatpush1.msra.mxu0 %v1638
    %1676 = vmatprep.subr.mxu0 0.0
    %1677 = vmatpush1.msra.mxu0 %v1637
    %1678 = vmatprep.subr.mxu0 0.0
    %1679 = vmatpush1.msra.mxu0 %v1636
    %1680 = vmatprep.subr.mxu0 0.0
    %1681 = vmatpush1.msra.mxu0 %v1635
    %1682 = vmatprep.subr.mxu0 0.0
    %1683 = vmatpush1.msra.mxu0 %v1634
    %1684 = vmatprep.subr.mxu0 0.0
    %1685 = vmatpush2.msra.mxu0 0.0
    %1686 = vmatprep.subr.mxu0 0.0
    %1687 = vmatpush2.msra.mxu0 0.0
    %1688 = vmatprep.subr.mxu0 0.0
    %1689 = vmatpush2.msra.mxu0 0.0
    %1690 = vmatprep.subr.mxu0 0.0
    %1691 = vmatpush2.msra.mxu0 0.0
    %1692 = vmatprep.subr.mxu0 0.0
    %1693 = vmatpush2.msra.mxu0 0.0
    %1694 = vmatprep.subr.mxu0 0.0
    %1695 = vmatpush2.msra.mxu0 0.0
    %1696 = vmatprep.subr.mxu0 0.0
    %1697 = vmatpush2.msra.mxu0 0.0
    %1698 = vmatprep.subr.mxu0 0.0
    %1699 = vmatpush2.msra.mxu0 0.0
    %1700 = vmatprep.subr.mxu0 0.0
    %1701 = vmatpush2.msra.mxu0 0.0
    %1702 = vmatprep.subr.mxu0 0.0
    %1703 = vmatpush2.msra.mxu0 0.0
    %1704 = vmatprep.subr.mxu0 0.0
    %1705 = vmatpush2.msra.mxu0 0.0
    %1706 = vmatprep.subr.mxu0 0.0
    %1707 = vmatpush2.msra.mxu0 0.0
    %1708 = vmatprep.subr.mxu0 0.0
    %1709 = vmatpush2.msra.mxu0 0.0
    %1710 = vmatprep.subr.mxu0 0.0
    %1711 = vmatpush2.msra.mxu0 0.0
    %1712 = vmatprep.subr.mxu0 0.0
    %1713 = vmatpush2.msra.mxu0 0.0
    %1714 = vmatprep.subr.mxu0 0.0
    %1715 = vmatpush2.msra.mxu0 0.0
    %1716 = vmatprep.mubr.f32.mxu0 0.0
    %1717 = vmatmul.mubr.f32.gmra.mxu0 %v1650
    %v1718 = vpop.f32.mrf.mxu0
    %v1719 = vadd.f32 %v1647, %v1718
    %v1720 = vpop.f32.mrf.mxu0
    %1721 = vdwg.mxu0
    %v1722 = vadd.f32 %v1548, %v1719
    %v1723 = vsel %vm353, %v1722, 0.0
    %v1724 = vrot.slane %v1723, 4
    %v1725 = vadd.f32 %v1723, %v1724
    %v1726 = vrot.slane %v1725, 2
    %v1727 = vadd.f32 %v1725, %v1726
    %v1728 = vrot.slane %v1727, 1
    %v1729 = vadd.f32 %v1727, %v1728
    %v1730 = vmul.f32 %v1729, %v1518
    %v1731 = vsub.f32 %v1722, %v1730
    %v1732 = vmul.f32 %v1731, %v1731
    %v1733 = vsel %vm353, %v1732, 0.0
    %v1734 = vrot.slane %v1733, 4
    %v1735 = vadd.f32 %v1733, %v1734
    %v1736 = vrot.slane %v1735, 2
    %v1737 = vadd.f32 %v1735, %v1736
    %v1738 = vrot.slane %v1737, 1
    %v1739 = vadd.f32 %v1737, %v1738
    %v1740 = vmul.f32 %v1739, %v1518
    %v1741 = vadd.f32 %v1740, 1e-05
    %v1742 = vrsqrt.pop %v1741
    %v1743 = vmul.f32 %v1731, %v1742
    %v1744 = vld [vmem:[#allocation16] sm:$0x1]
    %v1746 = vlaneseq
    %v1747 = vshrl.u32 %v1746, 7
    %v1748 = vsub.s32 0, %v1747
    %v1749 = vrot.slane %v1744, %v1748
    %v1751 = vmul.f32 %v1743, %v1749
    %v1752 = vld [vmem:[#allocation17] sm:$0x1]
    %v1754 = vlaneseq
    %v1755 = vshrl.u32 %v1754, 7
    %v1756 = vsub.s32 0, %v1755
    %v1757 = vrot.slane %v1752, %v1756
    %v1759 = vadd.f32 %v1751, %v1757
    %1760 = vst.msk [vmem:[#allocation31] sm:$0xff] %vm353, %v1759
    %v1761 = vld [vmem:[%s39] sm:$0xff]
    %v1762 = vld [vmem:[%s39 + $0x8] sm:$0xff]
    %v1763 = vld [vmem:[%s39 + $0x10] sm:$0xff]
    %v1764 = vld [vmem:[%s39 + $0x18] sm:$0xff]
    %v1765 = vld [vmem:[#allocation19] sm:$0x1]
    %v1767 = vlaneseq
    %v1768 = vshrl.u32 %v1767, 7
    %v1769 = vsub.s32 0, %v1768
    %v1770 = vrot.slane %v1765, %v1769
    %1772 = vmatprep.subr.mxu0 0.0
    %1773 = vmatpush1.msra.mxu0 0.0
    %1774 = vmatprep.subr.mxu0 0.0
    %1775 = vmatpush1.msra.mxu0 0.0
    %1776 = vmatprep.subr.mxu0 0.0
    %1777 = vmatpush1.msra.mxu0 0.0
    %1778 = vmatprep.subr.mxu0 0.0
    %1779 = vmatpush1.msra.mxu0 0.0
    %1780 = vmatprep.subr.mxu0 0.0
    %1781 = vmatpush1.msra.mxu0 0.0
    %1782 = vmatprep.subr.mxu0 0.0
    %1783 = vmatpush1.msra.mxu0 0.0
    %1784 = vmatprep.subr.mxu0 0.0
    %1785 = vmatpush1.msra.mxu0 0.0
    %1786 = vmatprep.subr.mxu0 0.0
    %1787 = vmatpush1.msra.mxu0 0.0
    %1788 = vmatprep.subr.mxu0 0.0
    %1789 = vmatpush1.msra.mxu0 0.0
    %1790 = vmatprep.subr.mxu0 0.0
    %1791 = vmatpush1.msra.mxu0 0.0
    %1792 = vmatprep.subr.mxu0 0.0
    %1793 = vmatpush1.msra.mxu0 0.0
    %1794 = vmatprep.subr.mxu0 0.0
    %1795 = vmatpush1.msra.mxu0 0.0
    %1796 = vmatprep.subr.mxu0 0.0
    %1797 = vmatpush1.msra.mxu0 %v1764
    %1798 = vmatprep.subr.mxu0 0.0
    %1799 = vmatpush1.msra.mxu0 %v1763
    %1800 = vmatprep.subr.mxu0 0.0
    %1801 = vmatpush1.msra.mxu0 %v1762
    %1802 = vmatprep.subr.mxu0 0.0
    %1803 = vmatpush1.msra.mxu0 %v1761
    %1804 = vmatprep.subr.mxu0 0.0
    %1805 = vmatpush2.msra.mxu0 0.0
    %1806 = vmatprep.subr.mxu0 0.0
    %1807 = vmatpush2.msra.mxu0 0.0
    %1808 = vmatprep.subr.mxu0 0.0
    %1809 = vmatpush2.msra.mxu0 0.0
    %1810 = vmatprep.subr.mxu0 0.0
    %1811 = vmatpush2.msra.mxu0 0.0
    %1812 = vmatprep.subr.mxu0 0.0
    %1813 = vmatpush2.msra.mxu0 0.0
    %1814 = vmatprep.subr.mxu0 0.0
    %1815 = vmatpush2.msra.mxu0 0.0
    %1816 = vmatprep.subr.mxu0 0.0
    %1817 = vmatpush2.msra.mxu0 0.0
    %1818 = vmatprep.subr.mxu0 0.0
    %1819 = vmatpush2.msra.mxu0 0.0
    %1820 = vmatprep.subr.mxu0 0.0
    %1821 = vmatpush2.msra.mxu0 0.0
    %1822 = vmatprep.subr.mxu0 0.0
    %1823 = vmatpush2.msra.mxu0 0.0
    %1824 = vmatprep.subr.mxu0 0.0
    %1825 = vmatpush2.msra.mxu0 0.0
    %1826 = vmatprep.subr.mxu0 0.0
    %1827 = vmatpush2.msra.mxu0 0.0
    %1828 = vmatprep.subr.mxu0 0.0
    %1829 = vmatpush2.msra.mxu0 0.0
    %1830 = vmatprep.subr.mxu0 0.0
    %1831 = vmatpush2.msra.mxu0 0.0
    %1832 = vmatprep.subr.mxu0 0.0
    %1833 = vmatpush2.msra.mxu0 0.0
    %1834 = vmatprep.subr.mxu0 0.0
    %1835 = vmatpush2.msra.mxu0 0.0
    %1836 = vmatprep.mubr.f32.mxu0 0.0
    %1837 = vmatmul.mubr.f32.gmra.mxu0 %v976
    %v1838 = vpop.f32.mrf.mxu0
    %v1839 = vadd.f32 %v1770, %v1838
    %v1840 = vpop.f32.mrf.mxu0
    %1841 = vmatprep.mubr.f32.mxu0 0.0
    %1842 = vmatmul.mubr.f32.gmra.mxu0 %v979
    %v1843 = vpop.f32.mrf.mxu0
    %v1844 = vadd.f32 %v1770, %v1843
    %v1845 = vpop.f32.mrf.mxu0
    %1846 = vmatprep.mubr.f32.mxu0 0.0
    %1847 = vmatmul.mubr.f32.gmra.mxu0 %v982
    %v1848 = vpop.f32.mrf.mxu0
    %v1849 = vadd.f32 %v1770, %v1848
    %v1850 = vpop.f32.mrf.mxu0
    %1851 = vmatprep.mubr.f32.mxu0 0.0
    %1852 = vmatmul.mubr.f32.gmra.mxu0 %v985
    %v1853 = vpop.f32.mrf.mxu0
    %v1854 = vadd.f32 %v1770, %v1853
    %v1855 = vpop.f32.mrf.mxu0
    %1856 = vmatprep.mubr.f32.mxu0 0.0
    %1857 = vmatmul.mubr.f32.gmra.mxu0 %v988
    %v1858 = vpop.f32.mrf.mxu0
    %v1859 = vadd.f32 %v1770, %v1858
    %v1860 = vpop.f32.mrf.mxu0
    %1861 = vmatprep.mubr.f32.mxu0 0.0
    %1862 = vmatmul.mubr.f32.gmra.mxu0 %v991
    %v1863 = vpop.f32.mrf.mxu0
    %v1864 = vadd.f32 %v1770, %v1863
    %v1865 = vpop.f32.mrf.mxu0
    %1866 = vmatprep.mubr.f32.mxu0 0.0
    %1867 = vmatmul.mubr.f32.gmra.mxu0 %v994
    %v1868 = vpop.f32.mrf.mxu0
    %v1869 = vadd.f32 %v1770, %v1868
    %v1870 = vpop.f32.mrf.mxu0
    %1871 = vmatprep.mubr.f32.mxu0 0.0
    %1872 = vmatmul.mubr.f32.gmra.mxu0 %v997
    %v1873 = vpop.f32.mrf.mxu0
    %v1874 = vadd.f32 %v1770, %v1873
    %v1875 = vpop.f32.mrf.mxu0
    %1876 = vdwg.mxu0
    %v1877 = vadd.f32 %v341, %v1839
    %v1878 = vadd.f32 %v342, %v1844
    %v1879 = vadd.f32 %v343, %v1849
    %v1880 = vadd.f32 %v344, %v1854
    %v1881 = vadd.f32 %v345, %v1859
    %v1882 = vadd.f32 %v346, %v1864
    %v1883 = vadd.f32 %v347, %v1869
    %v1884 = vadd.f32 %v348, %v1874
    %v1885 = vsel %vm353, %v1877, 0.0
    %v1886 = vsel %vm353, %v1878, 0.0
    %v1887 = vadd.f32 %v1885, %v1886
    %v1888 = vsel %vm353, %v1879, 0.0
    %v1889 = vadd.f32 %v1887, %v1888
    %v1890 = vsel %vm353, %v1880, 0.0
    %v1891 = vadd.f32 %v1889, %v1890
    %v1892 = vsel %vm353, %v1881, 0.0
    %v1893 = vadd.f32 %v1891, %v1892
    %v1894 = vsel %vm353, %v1882, 0.0
    %v1895 = vadd.f32 %v1893, %v1894
    %v1896 = vsel %vm353, %v1883, 0.0
    %v1897 = vadd.f32 %v1895, %v1896
    %v1898 = vsel %vm353, %v1884, 0.0
    %v1899 = vadd.f32 %v1897, %v1898
    %v1900 = vrot.slane %v1899, 4
    %v1901 = vadd.f32 %v1899, %v1900
    %v1902 = vrot.slane %v1901, 2
    %v1903 = vadd.f32 %v1901, %v1902
    %v1904 = vrot.slane %v1903, 1
    %v1905 = vadd.f32 %v1903, %v1904
    %v1906 = vrcp.pop 64.0
    %v1907 = vmul.f32 %v1905, %v1906
    %v1908 = vsub.f32 %v1877, %v1907
    %v1909 = vsub.f32 %v1878, %v1907
    %v1910 = vsub.f32 %v1879, %v1907
    %v1911 = vsub.f32 %v1880, %v1907
    %v1912 = vsub.f32 %v1881, %v1907
    %v1913 = vsub.f32 %v1882, %v1907
    %v1914 = vsub.f32 %v1883, %v1907
    %v1915 = vsub.f32 %v1884, %v1907
    %v1916 = vmul.f32 %v1908, %v1908
    %v1917 = vmul.f32 %v1909, %v1909
    %v1918 = vmul.f32 %v1910, %v1910
    %v1919 = vmul.f32 %v1911, %v1911
    %v1920 = vmul.f32 %v1912, %v1912
    %v1921 = vmul.f32 %v1913, %v1913
    %v1922 = vmul.f32 %v1914, %v1914
    %v1923 = vmul.f32 %v1915, %v1915
    %v1924 = vsel %vm353, %v1916, 0.0
    %v1925 = vsel %vm353, %v1917, 0.0
    %v1926 = vadd.f32 %v1924, %v1925
    %v1927 = vsel %vm353, %v1918, 0.0
    %v1928 = vadd.f32 %v1926, %v1927
    %v1929 = vsel %vm353, %v1919, 0.0
    %v1930 = vadd.f32 %v1928, %v1929
    %v1931 = vsel %vm353, %v1920, 0.0
    %v1932 = vadd.f32 %v1930, %v1931
    %v1933 = vsel %vm353, %v1921, 0.0
    %v1934 = vadd.f32 %v1932, %v1933
    %v1935 = vsel %vm353, %v1922, 0.0
    %v1936 = vadd.f32 %v1934, %v1935
    %v1937 = vsel %vm353, %v1923, 0.0
    %v1938 = vadd.f32 %v1936, %v1937
    %v1939 = vrot.slane %v1938, 4
    %v1940 = vadd.f32 %v1938, %v1939
    %v1941 = vrot.slane %v1940, 2
    %v1942 = vadd.f32 %v1940, %v1941
    %v1943 = vrot.slane %v1942, 1
    %v1944 = vadd.f32 %v1942, %v1943
    %v1945 = vmul.f32 %v1944, %v1906
    %v1946 = vadd.f32 %v1945, 1e-05
    %v1947 = vrsqrt.pop %v1946
    %v1948 = vmul.f32 %v1908, %v1947
    %v1949 = vmul.f32 %v1909, %v1947
    %v1950 = vmul.f32 %v1910, %v1947
    %v1951 = vmul.f32 %v1911, %v1947
    %v1952 = vmul.f32 %v1912, %v1947
    %v1953 = vmul.f32 %v1913, %v1947
    %v1954 = vmul.f32 %v1914, %v1947
    %v1955 = vmul.f32 %v1915, %v1947
    %v1956 = vld [vmem:[#allocation20] sm:$0x1]
    %v1958 = vlaneseq
    %v1959 = vshrl.u32 %v1958, 7
    %v1960 = vsub.s32 0, %v1959
    %v1961 = vrot.slane %v1956, %v1960
    %v1963 = vmul.f32 %v1948, %v1961
    %v1964 = vmul.f32 %v1949, %v1961
    %v1965 = vmul.f32 %v1950, %v1961
    %v1966 = vmul.f32 %v1951, %v1961
    %v1967 = vmul.f32 %v1952, %v1961
    %v1968 = vmul.f32 %v1953, %v1961
    %v1969 = vmul.f32 %v1954, %v1961
    %v1970 = vmul.f32 %v1955, %v1961
    %v1971 = vld [vmem:[#allocation22] sm:$0x1]
    %v1973 = vlaneseq
    %v1974 = vshrl.u32 %v1973, 7
    %v1975 = vsub.s32 0, %v1974
    %v1976 = vrot.slane %v1971, %v1975
    %v1978 = vadd.f32 %v1963, %v1976
    %v1979 = vadd.f32 %v1964, %v1976
    %v1980 = vadd.f32 %v1965, %v1976
    %v1981 = vadd.f32 %v1966, %v1976
    %v1982 = vadd.f32 %v1967, %v1976
    %v1983 = vadd.f32 %v1968, %v1976
    %v1984 = vadd.f32 %v1969, %v1976
    %v1985 = vadd.f32 %v1970, %v1976
    %v1986 = vld [vmem:[#allocation23] sm:$0xff]
    %v1987 = vld [vmem:[#allocation23 + $0x8] sm:$0xff]
    %v1988 = vld [vmem:[#allocation23 + $0x10] sm:$0xff]
    %v1989 = vld [vmem:[#allocation23 + $0x18] sm:$0xff]
    %v1990 = vld [vmem:[#allocation25] sm:$0x1]
    %v1992 = vlaneseq
    %v1993 = vshrl.u32 %v1992, 7
    %v1994 = vsub.s32 0, %v1993
    %v1995 = vrot.slane %v1990, %v1994
    %v1998 = vsel %vm353, %v1978, 0
    %v2001 = vsel %vm353, %v1979, 0
    %v2004 = vsel %vm353, %v1980, 0
    %v2007 = vsel %vm353, %v1981, 0
    %v2010 = vsel %vm353, %v1982, 0
    %v2013 = vsel %vm353, %v1983, 0
    %v2016 = vsel %vm353, %v1984, 0
    %v2019 = vsel %vm353, %v1985, 0
    %2021 = vmatprep.subr.mxu0 0.0
    %2022 = vmatpush1.msra.mxu0 0.0
    %2023 = vmatprep.subr.mxu0 0.0
    %2024 = vmatpush1.msra.mxu0 0.0
    %2025 = vmatprep.subr.mxu0 0.0
    %2026 = vmatpush1.msra.mxu0 0.0
    %2027 = vmatprep.subr.mxu0 0.0
    %2028 = vmatpush1.msra.mxu0 0.0
    %2029 = vmatprep.subr.mxu0 0.0
    %2030 = vmatpush1.msra.mxu0 0.0
    %2031 = vmatprep.subr.mxu0 0.0
    %2032 = vmatpush1.msra.mxu0 0.0
    %2033 = vmatprep.subr.mxu0 0.0
    %2034 = vmatpush1.msra.mxu0 0.0
    %2035 = vmatprep.subr.mxu0 0.0
    %2036 = vmatpush1.msra.mxu0 0.0
    %2037 = vmatprep.subr.mxu0 0.0
    %2038 = vmatpush1.msra.mxu0 0.0
    %2039 = vmatprep.subr.mxu0 0.0
    %2040 = vmatpush1.msra.mxu0 0.0
    %2041 = vmatprep.subr.mxu0 0.0
    %2042 = vmatpush1.msra.mxu0 0.0
    %2043 = vmatprep.subr.mxu0 0.0
    %2044 = vmatpush1.msra.mxu0 0.0
    %2045 = vmatprep.subr.mxu0 0.0
    %2046 = vmatpush1.msra.mxu0 %v1989
    %2047 = vmatprep.subr.mxu0 0.0
    %2048 = vmatpush1.msra.mxu0 %v1988
    %2049 = vmatprep.subr.mxu0 0.0
    %2050 = vmatpush1.msra.mxu0 %v1987
    %2051 = vmatprep.subr.mxu0 0.0
    %2052 = vmatpush1.msra.mxu0 %v1986
    %2053 = vmatprep.subr.mxu0 0.0
    %2054 = vmatpush2.msra.mxu0 0.0
    %2055 = vmatprep.subr.mxu0 0.0
    %2056 = vmatpush2.msra.mxu0 0.0
    %2057 = vmatprep.subr.mxu0 0.0
    %2058 = vmatpush2.msra.mxu0 0.0
    %2059 = vmatprep.subr.mxu0 0.0
    %2060 = vmatpush2.msra.mxu0 0.0
    %2061 = vmatprep.subr.mxu0 0.0
    %2062 = vmatpush2.msra.mxu0 0.0
    %2063 = vmatprep.subr.mxu0 0.0
    %2064 = vmatpush2.msra.mxu0 0.0
    %2065 = vmatprep.subr.mxu0 0.0
    %2066 = vmatpush2.msra.mxu0 0.0
    %2067 = vmatprep.subr.mxu0 0.0
    %2068 = vmatpush2.msra.mxu0 0.0
    %2069 = vmatprep.subr.mxu0 0.0
    %2070 = vmatpush2.msra.mxu0 0.0
    %2071 = vmatprep.subr.mxu0 0.0
    %2072 = vmatpush2.msra.mxu0 0.0
    %2073 = vmatprep.subr.mxu0 0.0
    %2074 = vmatpush2.msra.mxu0 0.0
    %2075 = vmatprep.subr.mxu0 0.0
    %2076 = vmatpush2.msra.mxu0 0.0
    %2077 = vmatprep.subr.mxu0 0.0
    %2078 = vmatpush2.msra.mxu0 0.0
    %2079 = vmatprep.subr.mxu0 0.0
    %2080 = vmatpush2.msra.mxu0 0.0
    %2081 = vmatprep.subr.mxu0 0.0
    %2082 = vmatpush2.msra.mxu0 0.0
    %2083 = vmatprep.subr.mxu0 0.0
    %2084 = vmatpush2.msra.mxu0 0.0
    %2085 = vmatprep.mubr.f32.mxu0 0.0
    %2086 = vmatmul.mubr.f32.gmra.mxu0 %v1998
    %v2087 = vpop.f32.mrf.mxu0
    %v2088 = vadd.f32 %v1995, %v2087
    %v2089 = vpop.f32.mrf.mxu0
    %2090 = vmatprep.mubr.f32.mxu0 0.0
    %2091 = vmatmul.mubr.f32.gmra.mxu0 %v2001
    %v2092 = vpop.f32.mrf.mxu0
    %v2093 = vadd.f32 %v1995, %v2092
    %v2094 = vpop.f32.mrf.mxu0
    %2095 = vmatprep.mubr.f32.mxu0 0.0
    %2096 = vmatmul.mubr.f32.gmra.mxu0 %v2004
    %v2097 = vpop.f32.mrf.mxu0
    %v2098 = vadd.f32 %v1995, %v2097
    %v2099 = vpop.f32.mrf.mxu0
    %2100 = vmatprep.mubr.f32.mxu0 0.0
    %2101 = vmatmul.mubr.f32.gmra.mxu0 %v2007
    %v2102 = vpop.f32.mrf.mxu0
    %v2103 = vadd.f32 %v1995, %v2102
    %v2104 = vpop.f32.mrf.mxu0
    %2105 = vmatprep.mubr.f32.mxu0 0.0
    %2106 = vmatmul.mubr.f32.gmra.mxu0 %v2010
    %v2107 = vpop.f32.mrf.mxu0
    %v2108 = vadd.f32 %v1995, %v2107
    %v2109 = vpop.f32.mrf.mxu0
    %2110 = vmatprep.mubr.f32.mxu0 0.0
    %2111 = vmatmul.mubr.f32.gmra.mxu0 %v2013
    %v2112 = vpop.f32.mrf.mxu0
    %v2113 = vadd.f32 %v1995, %v2112
    %v2114 = vpop.f32.mrf.mxu0
    %2115 = vmatprep.mubr.f32.mxu0 0.0
    %2116 = vmatmul.mubr.f32.gmra.mxu0 %v2016
    %v2117 = vpop.f32.mrf.mxu0
    %v2118 = vadd.f32 %v1995, %v2117
    %v2119 = vpop.f32.mrf.mxu0
    %2120 = vmatprep.mubr.f32.mxu0 0.0
    %2121 = vmatmul.mubr.f32.gmra.mxu0 %v2019
    %v2122 = vpop.f32.mrf.mxu0
    %v2123 = vadd.f32 %v1995, %v2122
    %v2124 = vpop.f32.mrf.mxu0
    %2125 = vdwg.mxu0
    %v2126 = vmax.f32 %v2088, 0.0
    %v2127 = vmax.f32 %v2093, 0.0
    %v2128 = vmax.f32 %v2098, 0.0
    %v2129 = vmax.f32 %v2103, 0.0
    %v2130 = vmax.f32 %v2108, 0.0
    %v2131 = vmax.f32 %v2113, 0.0
    %v2132 = vmax.f32 %v2118, 0.0
    %v2133 = vmax.f32 %v2123, 0.0
    %v2134 = vld [vmem:[%s51] sm:$0xff]
    %v2135 = vld [vmem:[%s51 + $0x8] sm:$0xff]
    %v2136 = vld [vmem:[%s51 + $0x10] sm:$0xff]
    %v2137 = vld [vmem:[%s51 + $0x18] sm:$0xff]
    %v2138 = vld [vmem:[%s51 + $0x20] sm:$0xff]
    %v2139 = vld [vmem:[%s51 + $0x28] sm:$0xff]
    %v2140 = vld [vmem:[%s51 + $0x30] sm:$0xff]
    %v2141 = vld [vmem:[%s51 + $0x38] sm:$0xff]
    %v2142 = vld [vmem:[#allocation26] sm:$0x1]
    %v2144 = vlaneseq
    %v2145 = vshrl.u32 %v2144, 7
    %v2146 = vsub.s32 0, %v2145
    %v2147 = vrot.slane %v2142, %v2146
    %v2150 = vsel %vm1280, %v2126, 0
    %v2153 = vsel %vm1280, %v2127, 0
    %v2156 = vsel %vm1280, %v2128, 0
    %v2159 = vsel %vm1280, %v2129, 0
    %v2162 = vsel %vm1280, %v2130, 0
    %v2165 = vsel %vm1280, %v2131, 0
    %v2168 = vsel %vm1280, %v2132, 0
    %v2171 = vsel %vm1280, %v2133, 0
    %2173 = vmatprep.subr.mxu0 0.0
    %2174 = vmatpush1.msra.mxu0 0.0
    %2175 = vmatprep.subr.mxu0 0.0
    %2176 = vmatpush1.msra.mxu0 0.0
    %2177 = vmatprep.subr.mxu0 0.0
    %2178 = vmatpush1.msra.mxu0 0.0
    %2179 = vmatprep.subr.mxu0 0.0
    %2180 = vmatpush1.msra.mxu0 0.0
    %2181 = vmatprep.subr.mxu0 0.0
    %2182 = vmatpush1.msra.mxu0 0.0
    %2183 = vmatprep.subr.mxu0 0.0
    %2184 = vmatpush1.msra.mxu0 0.0
    %2185 = vmatprep.subr.mxu0 0.0
    %2186 = vmatpush1.msra.mxu0 0.0
    %2187 = vmatprep.subr.mxu0 0.0
    %2188 = vmatpush1.msra.mxu0 0.0
    %2189 = vmatprep.subr.mxu0 0.0
    %2190 = vmatpush1.msra.mxu0 %v2141
    %2191 = vmatprep.subr.mxu0 0.0
    %2192 = vmatpush1.msra.mxu0 %v2140
    %2193 = vmatprep.subr.mxu0 0.0
    %2194 = vmatpush1.msra.mxu0 %v2139
    %2195 = vmatprep.subr.mxu0 0.0
    %2196 = vmatpush1.msra.mxu0 %v2138
    %2197 = vmatprep.subr.mxu0 0.0
    %2198 = vmatpush1.msra.mxu0 %v2137
    %2199 = vmatprep.subr.mxu0 0.0
    %2200 = vmatpush1.msra.mxu0 %v2136
    %2201 = vmatprep.subr.mxu0 0.0
    %2202 = vmatpush1.msra.mxu0 %v2135
    %2203 = vmatprep.subr.mxu0 0.0
    %2204 = vmatpush1.msra.mxu0 %v2134
    %2205 = vmatprep.subr.mxu0 0.0
    %2206 = vmatpush2.msra.mxu0 0.0
    %2207 = vmatprep.subr.mxu0 0.0
    %2208 = vmatpush2.msra.mxu0 0.0
    %2209 = vmatprep.subr.mxu0 0.0
    %2210 = vmatpush2.msra.mxu0 0.0
    %2211 = vmatprep.subr.mxu0 0.0
    %2212 = vmatpush2.msra.mxu0 0.0
    %2213 = vmatprep.subr.mxu0 0.0
    %2214 = vmatpush2.msra.mxu0 0.0
    %2215 = vmatprep.subr.mxu0 0.0
    %2216 = vmatpush2.msra.mxu0 0.0
    %2217 = vmatprep.subr.mxu0 0.0
    %2218 = vmatpush2.msra.mxu0 0.0
    %2219 = vmatprep.subr.mxu0 0.0
    %2220 = vmatpush2.msra.mxu0 0.0
    %2221 = vmatprep.subr.mxu0 0.0
    %2222 = vmatpush2.msra.mxu0 0.0
    %2223 = vmatprep.subr.mxu0 0.0
    %2224 = vmatpush2.msra.mxu0 0.0
    %2225 = vmatprep.subr.mxu0 0.0
    %2226 = vmatpush2.msra.mxu0 0.0
    %2227 = vmatprep.subr.mxu0 0.0
    %2228 = vmatpush2.msra.mxu0 0.0
    %2229 = vmatprep.subr.mxu0 0.0
    %2230 = vmatpush2.msra.mxu0 0.0
    %2231 = vmatprep.subr.mxu0 0.0
    %2232 = vmatpush2.msra.mxu0 0.0
    %2233 = vmatprep.subr.mxu0 0.0
    %2234 = vmatpush2.msra.mxu0 0.0
    %2235 = vmatprep.subr.mxu0 0.0
    %2236 = vmatpush2.msra.mxu0 0.0
    %2237 = vmatprep.mubr.f32.mxu0 0.0
    %2238 = vmatmul.mubr.f32.gmra.mxu0 %v2150
    %v2239 = vpop.f32.mrf.mxu0
    %v2240 = vadd.f32 %v2147, %v2239
    %v2241 = vpop.f32.mrf.mxu0
    %2242 = vmatprep.mubr.f32.mxu0 0.0
    %2243 = vmatmul.mubr.f32.gmra.mxu0 %v2153
    %v2244 = vpop.f32.mrf.mxu0
    %v2245 = vadd.f32 %v2147, %v2244
    %v2246 = vpop.f32.mrf.mxu0
    %2247 = vmatprep.mubr.f32.mxu0 0.0
    %2248 = vmatmul.mubr.f32.gmra.mxu0 %v2156
    %v2249 = vpop.f32.mrf.mxu0
    %v2250 = vadd.f32 %v2147, %v2249
    %v2251 = vpop.f32.mrf.mxu0
    %2252 = vmatprep.mubr.f32.mxu0 0.0
    %2253 = vmatmul.mubr.f32.gmra.mxu0 %v2159
    %v2254 = vpop.f32.mrf.mxu0
    %v2255 = vadd.f32 %v2147, %v2254
    %v2256 = vpop.f32.mrf.mxu0
    %2257 = vmatprep.mubr.f32.mxu0 0.0
    %2258 = vmatmul.mubr.f32.gmra.mxu0 %v2162
    %v2259 = vpop.f32.mrf.mxu0
    %v2260 = vadd.f32 %v2147, %v2259
    %v2261 = vpop.f32.mrf.mxu0
    %2262 = vmatprep.mubr.f32.mxu0 0.0
    %2263 = vmatmul.mubr.f32.gmra.mxu0 %v2165
    %v2264 = vpop.f32.mrf.mxu0
    %v2265 = vadd.f32 %v2147, %v2264
    %v2266 = vpop.f32.mrf.mxu0
    %2267 = vmatprep.mubr.f32.mxu0 0.0
    %2268 = vmatmul.mubr.f32.gmra.mxu0 %v2168
    %v2269 = vpop.f32.mrf.mxu0
    %v2270 = vadd.f32 %v2147, %v2269
    %v2271 = vpop.f32.mrf.mxu0
    %2272 = vmatprep.mubr.f32.mxu0 0.0
    %2273 = vmatmul.mubr.f32.gmra.mxu0 %v2171
    %v2274 = vpop.f32.mrf.mxu0
    %v2275 = vadd.f32 %v2147, %v2274
    %v2276 = vpop.f32.mrf.mxu0
    %2277 = vdwg.mxu0
    %v2278 = vadd.f32 %v1978, %v2240
    %v2279 = vadd.f32 %v1979, %v2245
    %v2280 = vadd.f32 %v1980, %v2250
    %v2281 = vadd.f32 %v1981, %v2255
    %v2282 = vadd.f32 %v1982, %v2260
    %v2283 = vadd.f32 %v1983, %v2265
    %v2284 = vadd.f32 %v1984, %v2270
    %v2285 = vadd.f32 %v1985, %v2275
    %v2286 = vsel %vm353, %v2278, 0.0
    %v2287 = vsel %vm353, %v2279, 0.0
    %v2288 = vadd.f32 %v2286, %v2287
    %v2289 = vsel %vm353, %v2280, 0.0
    %v2290 = vadd.f32 %v2288, %v2289
    %v2291 = vsel %vm353, %v2281, 0.0
    %v2292 = vadd.f32 %v2290, %v2291
    %v2293 = vsel %vm353, %v2282, 0.0
    %v2294 = vadd.f32 %v2292, %v2293
    %v2295 = vsel %vm353, %v2283, 0.0
    %v2296 = vadd.f32 %v2294, %v2295
    %v2297 = vsel %vm353, %v2284, 0.0
    %v2298 = vadd.f32 %v2296, %v2297
    %v2299 = vsel %vm353, %v2285, 0.0
    %v2300 = vadd.f32 %v2298, %v2299
    %v2301 = vrot.slane %v2300, 4
    %v2302 = vadd.f32 %v2300, %v2301
    %v2303 = vrot.slane %v2302, 2
    %v2304 = vadd.f32 %v2302, %v2303
    %v2305 = vrot.slane %v2304, 1
    %v2306 = vadd.f32 %v2304, %v2305
    %v2307 = vmul.f32 %v2306, %v1906
    %v2308 = vsub.f32 %v2278, %v2307
    %v2309 = vsub.f32 %v2279, %v2307
    %v2310 = vsub.f32 %v2280, %v2307
    %v2311 = vsub.f32 %v2281, %v2307
    %v2312 = vsub.f32 %v2282, %v2307
    %v2313 = vsub.f32 %v2283, %v2307
    %v2314 = vsub.f32 %v2284, %v2307
    %v2315 = vsub.f32 %v2285, %v2307
    %v2316 = vmul.f32 %v2308, %v2308
    %v2317 = vmul.f32 %v2309, %v2309
    %v2318 = vmul.f32 %v2310, %v2310
    %v2319 = vmul.f32 %v2311, %v2311
    %v2320 = vmul.f32 %v2312, %v2312
    %v2321 = vmul.f32 %v2313, %v2313
    %v2322 = vmul.f32 %v2314, %v2314
    %v2323 = vmul.f32 %v2315, %v2315
    %v2324 = vsel %vm353, %v2316, 0.0
    %v2325 = vsel %vm353, %v2317, 0.0
    %v2326 = vadd.f32 %v2324, %v2325
    %v2327 = vsel %vm353, %v2318, 0.0
    %v2328 = vadd.f32 %v2326, %v2327
    %v2329 = vsel %vm353, %v2319, 0.0
    %v2330 = vadd.f32 %v2328, %v2329
    %v2331 = vsel %vm353, %v2320, 0.0
    %v2332 = vadd.f32 %v2330, %v2331
    %v2333 = vsel %vm353, %v2321, 0.0
    %v2334 = vadd.f32 %v2332, %v2333
    %v2335 = vsel %vm353, %v2322, 0.0
    %v2336 = vadd.f32 %v2334, %v2335
    %v2337 = vsel %vm353, %v2323, 0.0
    %v2338 = vadd.f32 %v2336, %v2337
    %v2339 = vrot.slane %v2338, 4
    %v2340 = vadd.f32 %v2338, %v2339
    %v2341 = vrot.slane %v2340, 2
    %v2342 = vadd.f32 %v2340, %v2341
    %v2343 = vrot.slane %v2342, 1
    %v2344 = vadd.f32 %v2342, %v2343
    %v2345 = vmul.f32 %v2344, %v1906
    %v2346 = vadd.f32 %v2345, 1e-05
    %v2347 = vrsqrt.pop %v2346
    %v2348 = vmul.f32 %v2308, %v2347
    %v2349 = vmul.f32 %v2309, %v2347
    %v2350 = vmul.f32 %v2310, %v2347
    %v2351 = vmul.f32 %v2311, %v2347
    %v2352 = vmul.f32 %v2312, %v2347
    %v2353 = vmul.f32 %v2313, %v2347
    %v2354 = vmul.f32 %v2314, %v2347
    %v2355 = vmul.f32 %v2315, %v2347
    %v2356 = vld [vmem:[#allocation28] sm:$0x1]
    %v2358 = vlaneseq
    %v2359 = vshrl.u32 %v2358, 7
    %v2360 = vsub.s32 0, %v2359
    %v2361 = vrot.slane %v2356, %v2360
    %v2363 = vmul.f32 %v2348, %v2361
    %v2364 = vmul.f32 %v2349, %v2361
    %v2365 = vmul.f32 %v2350, %v2361
    %v2366 = vmul.f32 %v2351, %v2361
    %v2367 = vmul.f32 %v2352, %v2361
    %v2368 = vmul.f32 %v2353, %v2361
    %v2369 = vmul.f32 %v2354, %v2361
    %v2370 = vmul.f32 %v2355, %v2361
    %v2371 = vld [vmem:[#allocation29] sm:$0x1]
    %v2373 = vlaneseq
    %v2374 = vshrl.u32 %v2373, 7
    %v2375 = vsub.s32 0, %v2374
    %v2376 = vrot.slane %v2371, %v2375
    %v2378 = vadd.f32 %v2363, %v2376
    %v2379 = vadd.f32 %v2364, %v2376
    %v2380 = vadd.f32 %v2365, %v2376
    %v2381 = vadd.f32 %v2366, %v2376
    %v2382 = vadd.f32 %v2367, %v2376
    %v2383 = vadd.f32 %v2368, %v2376
    %v2384 = vadd.f32 %v2369, %v2376
    %v2385 = vadd.f32 %v2370, %v2376
    %2386 = vst.msk [vmem:[%s61] sm:$0xff] %vm353, %v2378
    %2387 = vst.msk [vmem:[%s61 + $0x8] sm:$0xff] %vm353, %v2379
    %2388 = vst.msk [vmem:[%s61 + $0x10] sm:$0xff] %vm353, %v2380
    %2389 = vst.msk [vmem:[%s61 + $0x18] sm:$0xff] %vm353, %v2381
    %2390 = vst.msk [vmem:[%s61 + $0x20] sm:$0xff] %vm353, %v2382
    %2391 = vst.msk [vmem:[%s61 + $0x28] sm:$0xff] %vm353, %v2383
    %2392 = vst.msk [vmem:[%s61 + $0x30] sm:$0xff] %vm353, %v2384
    %2393 = vst.msk [vmem:[%s61 + $0x38] sm:$0xff] %vm353, %v2385
    // Predicated region
    $region190: #{graph_transformer_layer.1} parent=1 // pred_check
      _
    $region191: #{graph_transformer_layer.1} parent=1 // pred_check_branch
      %2395 = sbr.rel (0) target = $region193
    $region192: #{graph_transformer_layer.1} parent=1 // pred_region
      %s2397 = ssub.s32 128, 128
      %2398 = vsyncadd [#allocation4], %s2397
      %s2400 = sshll.u32 [#allocation31], 4
      %s2401 = int_to_ptr.vmem [resolvable:$true] %s2400
      %2403 = dma.vmem_to_hbm [thread:$0]  %s2401, 128, %s59, [#allocation4]
    $region193: #{graph_transformer_layer.1} parent=1 // pred_fallthru
      _
    // Predicated region
    $region194: #{graph_transformer_layer.1} parent=1 // pred_check
      _
    $region195: #{graph_transformer_layer.1} parent=1 // pred_check_branch
      %2405 = sbr.rel (0) target = $region197
    $region196: #{graph_transformer_layer.1} parent=1 // pred_region
      _
    $region197: #{graph_transformer_layer.1} parent=1 // pred_fallthru
      _
    // Predicated region
    $region198: #{graph_transformer_layer.1} parent=1 // pred_check
      _
    $region199: #{graph_transformer_layer.1} parent=1 // pred_check_branch
      %2407 = sbr.rel (0) target = $region201
    $region200: #{graph_transformer_layer.1} parent=1 // pred_region
      %2408 = dma.done [#allocation4], 128
    $region201: #{graph_transformer_layer.1} parent=1 // pred_fallthru
      _
    // Predicated region
    $region202: #{graph_transformer_layer.1} parent=1 // pred_check
      _
    $region203: #{graph_transformer_layer.1} parent=1 // pred_check_branch
      %2410 = sbr.rel (0) target = $region205
    $region204: #{graph_transformer_layer.1} parent=1 // pred_region
      _
    $region205: #{graph_transformer_layer.1} parent=1 // pred_fallthru
      _
    %2411 = vsyncpa [#allocation3], 1
    %2412 = vsyncpa [#allocation6], 1
    %2413 = vsyncpa [#allocation9], 1
    %2414 = vsyncpa [#allocation12], 1
    %2415 = vsyncpa [#allocation15], 1
    %2416 = vsyncpa [#allocation18], 1
    %2417 = vsyncpa [#allocation21], 1
    %2418 = vsyncpa [#allocation24], 1
    %2419 = vsyncpa [#allocation27], 1
    %2420 = vsyncpa [#allocation30], 1
    %2421 = vsyncpa [#allocation4], 1

</llo_original>
